<compile_context>
chip_gen: v5e
topology: v5e:2x2
jax: 0.10.0
libtpu: 0.0.40
codegen_flags: <defaults>
</compile_context>

<pallas_src>
import numpy as np
import jax
import jax.numpy as jnp
from jax.experimental import pallas as pl
from jax.experimental.pallas import tpu as pltpu

DILATION_P = 16
CNN_C, CNN_W, CNN_H = 3, 227, 227
CNN_W_PAD = 232   # 227 -> multiple of 8   (sublanes)
CNN_H_PAD = 256   # 227 -> multiple of 128 (lanes)


def _round_up(v, m):
    return ((v + m - 1) // m) * m


def _align_down(v, m):
    return (v // m) * m


def _crop_params(rects, im_h, im_w):
    """Per-rect dilated+clamped crop box and nearest-neighbor sample indices
    (absolute image coordinates), matching the torch/cv2 reference semantics."""
    params = []
    for rect in np.asarray(rects):
        x, y, w, h = (int(v) for v in rect[:4])
        x_min = max(0, x - DILATION_P)
        x_max = min(im_w, x + w + DILATION_P)
        y_min = max(0, y - DILATION_P)
        y_max = min(im_h, y + h + DILATION_P)
        # Guard degenerate rects (empty / fully outside): clamp to a valid 1px crop.
        x_min = min(max(x_min, 0), im_w - 1)
        y_min = min(max(y_min, 0), im_h - 1)
        crop_w = min(max(1, x_max - x_min), im_w - x_min)
        crop_h = min(max(1, y_max - y_min), im_h - y_min)
        # floor(i * crop / N) matches cv2.resize INTER_NEAREST index mapping.
        cols = x_min + np.minimum(
            np.floor(np.arange(CNN_W) * (crop_w / CNN_W)).astype(np.int64), crop_w - 1)
        rows = y_min + np.minimum(
            np.floor(np.arange(CNN_H) * (crop_h / CNN_H)).astype(np.int64), crop_h - 1)
        params.append((x_min, crop_w, cols, y_min, crop_h, rows))
    return params


def _build_inputs(rects, im_h, im_w):
    """Aligned per-rect window offsets + window-relative index vectors."""
    params = _crop_params(rects, im_h, im_w)
    n = len(params)
    w_pad = _round_up(im_w, 8)
    h_pad = _round_up(im_h, 128)
    # Window extents: cover every rect's crop after snapping the window start down
    # to the (8,128) alignment grid; extents themselves are aligned and capped at
    # the padded image size so clamped window starts stay in bounds.
    mcw = min(w_pad, _round_up(max((p[0] - _align_down(p[0], 8)) + p[1]
                                   for p in params), 8))
    mch = min(h_pad, _round_up(max((p[3] - _align_down(p[3], 128)) + p[4]
                                   for p in params), 128))

    x0s = np.empty((n,), np.int32)
    y0s = np.empty((n,), np.int32)
    cols_rel = np.full((n, CNN_W_PAD, 1), -1, np.int32)   # -1 => padded output row
    rows_rel = np.full((n, 1, CNN_H_PAD), -1, np.int32)   # -1 => padded output col
    for i, (x_min, _cw, cols, y_min, _ch, rows) in enumerate(params):
        x0 = min(_align_down(x_min, 8), w_pad - mcw)      # multiple of 8, covers crop
        y0 = min(_align_down(y_min, 128), h_pad - mch)    # multiple of 128
        x0s[i], y0s[i] = x0, y0
        cols_rel[i, :CNN_W, 0] = cols - x0                # in [0, mcw)
        rows_rel[i, 0, :CNN_H] = rows - y0                # in [0, mch)
    return x0s, y0s, cols_rel, rows_rel, mcw, mch, w_pad, h_pad


def preprocess_image(im):
    """Rect-independent: channel-major transpose + zero-pad to (8,128)-aligned
    extents.  Cache the result across image_warp calls (hoisted out of the hot
    path per the perf review)."""
    im = jnp.asarray(im, jnp.float32)
    im_h, im_w, c = im.shape
    assert c == CNN_C
    w_pad = _round_up(im_w, 8)
    h_pad = _round_up(im_h, 128)
    imT = jnp.transpose(im, (2, 1, 0))                    # (C, W, H)
    return jnp.pad(imT, ((0, 0), (0, w_pad - im_w), (0, h_pad - im_h)))


def image_warp(im, rects, imT_padded=None):
    """im: (H_im, W_im, 3) float32; rects: (N, 4) int [x, y, w, h].
    Returns (N, 3, 227, 227) float32, matching ImageWarp.forward.
    Pass a cached preprocess_image(im) as imT_padded to skip per-call transpose."""
    im = jnp.asarray(im, jnp.float32)
    im_h, im_w, _ = im.shape
    if imT_padded is None:
        imT_padded = preprocess_image(im)

    # TODO(synk): bucket rects by crop size (one pallas_call per bucket) so one
    # large rect does not inflate DMA bytes / MXU MACs for the whole batch.
    x0s, y0s, cols_rel, rows_rel, mcw, mch, w_pad, h_pad = _build_inputs(
        rects, im_h, im_w)
    n = int(x0s.shape[0])

    # Pick the matmul order that minimizes MXU MACs for this window aspect:
    #   order A: (Rx @ win) @ RyT   cost ~ 232*mch*(mcw+256)
    #   order B:  Rx @ (win @ RyT)  cost ~ 256*mcw*(mch+232)
    order_a = CNN_W_PAD * mch * (mcw + CNN_H_PAD) <= CNN_H_PAD * mcw * (mch + CNN_W_PAD)
    tmp_shape = (CNN_C * CNN_W_PAD, mch) if order_a else (mcw, CNN_C * CNN_H_PAD)

    def kernel(x0_ref, y0_ref, cols_ref, rows_ref, imT_hbm, out_ref,
               win_ref, tmp_ref, sem_ref):
        i = pl.program_id(0)
        x0 = pl.multiple_of(x0_ref[i], 8)     # host guarantees the alignment
        y0 = pl.multiple_of(y0_ref[i], 128)

        def window_copy(ch, slot):
            return pltpu.make_async_copy(
                imT_hbm.at[ch, pl.ds(x0, mcw), pl.ds(y0, mch)],
                win_ref.at[slot], sem_ref.at[slot])

        # Double-buffered per-channel window DMA: start ch0/ch1 immediately; the
        # selector construction (VPU) and each channel's matmul hide the rest.
        window_copy(0, 0).start()
        window_copy(1, 1).start()

        # Build the one-hot selectors in-kernel from ~2 KB of index vectors
        # (iota + compare on the VPU; overlaps the DMAs in flight).
        cols = cols_ref[...]                                    # (232, 1) int32
        rows = rows_ref[...]                                    # (1, 256) int32
        rx = (jax.lax.broadcasted_iota(jnp.int32, (CNN_W_PAD, mcw), 1)
              == cols).astype(jnp.float32)                      # (232, mcw)
        ryT = (jax.lax.broadcasted_iota(jnp.int32, (mch, CNN_H_PAD), 0)
               == rows).astype(jnp.float32)                     # (mch, 256)

        for ch in range(CNN_C):                                 # static unroll
            slot = ch % 2
            window_copy(ch, slot).wait()
            win = win_ref[slot]                                 # (mcw, mch)
            if order_a:
                tmp_ref[pl.ds(ch * CNN_W_PAD, CNN_W_PAD), :] = jnp.dot(
                    rx, win, preferred_element_type=jnp.float32)
            else:
                tmp_ref[:, pl.ds(ch * CNN_H_PAD, CNN_H_PAD)] = jnp.dot(
                    win, ryT, preferred_element_type=jnp.float32)
            if ch + 2 < CNN_C:            # refill the just-consumed slot (ch==0)
                window_copy(ch + 2, slot).start()

        # Channel-batched second matmul against the shared selector.
        if order_a:
            out_all = jnp.dot(tmp_ref[...], ryT,
                              preferred_element_type=jnp.float32)   # (696, 256)
            for ch in range(CNN_C):
                out_ref[ch] = out_all[ch * CNN_W_PAD:(ch + 1) * CNN_W_PAD, :]
        else:
            out_all = jnp.dot(rx, tmp_ref[...],
                              preferred_element_type=jnp.float32)   # (232, 768)
            for ch in range(CNN_C):
                out_ref[ch] = out_all[:, ch * CNN_H_PAD:(ch + 1) * CNN_H_PAD]

    # Explicit VMEM budget (v5e's default scoped limit is only 16 MiB).
    est_words = (2 * mcw * mch                            # window double-buffer
                 + tmp_shape[0] * tmp_shape[1]            # stacked first-matmul tmp
                 + 2 * CNN_C * CNN_W_PAD * CNN_H_PAD      # pipelined out blocks
                 + CNN_W_PAD * max(mcw, 128) + mch * CNN_H_PAD   # rx / ryT temps
                 + CNN_C * CNN_W_PAD * CNN_H_PAD          # out_all temp
                 + 2 * (CNN_W_PAD * 128 + 8 * CNN_H_PAD)) # index blocks (padded)
    vmem_limit = min(96 << 20, max(32 << 20, int(est_words * 4 * 1.5)))
    # TODO(synk): for near-full-frame crops on v7x/v5e, K-tile the window along mcw
    # (accumulate the first matmul over K tiles) so VMEM stays bounded for any crop.

    out_padded = pl.pallas_call(
        kernel,
        out_shape=jax.ShapeDtypeStruct((n, CNN_C, CNN_W_PAD, CNN_H_PAD), jnp.float32),
        grid_spec=pltpu.PrefetchScalarGridSpec(
            num_scalar_prefetch=2,
            grid=(n,),
            in_specs=[
                pl.BlockSpec((pl.Squeezed(), CNN_W_PAD, 1),
                             lambda i, xs, ys: (i, 0, 0)),
                pl.BlockSpec((pl.Squeezed(), 1, CNN_H_PAD),
                             lambda i, xs, ys: (i, 0, 0)),
                pl.BlockSpec(memory_space=pl.ANY),        # image stays in HBM
            ],
            out_specs=pl.BlockSpec((pl.Squeezed(), CNN_C, CNN_W_PAD, CNN_H_PAD),
                                   lambda i, xs, ys: (i, 0, 0, 0)),
            scratch_shapes=[
                pltpu.VMEM((2, mcw, mch), jnp.float32),   # per-channel window, 2 slots
                pltpu.VMEM(tmp_shape, jnp.float32),       # channel-stacked tmp
                pltpu.SemaphoreType.DMA((2,)),
            ],
        ),
        compiler_params=pltpu.CompilerParams(
            dimension_semantics=("parallel",),            # rect axis -> 2 TCs on v7x
            vmem_limit_bytes=vmem_limit,
        ),
    )(jnp.asarray(x0s), jnp.asarray(y0s), jnp.asarray(cols_rel),
      jnp.asarray(rows_rel), imT_padded)

    return out_padded[:, :, :CNN_W, :CNN_H]


def _reference_numpy(im_np, rects):
    """Direct gather reference (same semantics as cv2.INTER_NEAREST crop+resize)."""
    im_h, im_w, _ = im_np.shape
    params = _crop_params(rects, im_h, im_w)
    out = np.empty((len(params), CNN_C, CNN_W, CNN_H), np.float32)
    for i, (_x0, _cw, cols, _y0, _ch, rows) in enumerate(params):
        resized = im_np[rows[:, None], cols[None, :], :]     # (CNN_H, CNN_W, C)
        out[i] = np.transpose(resized, (2, 1, 0))            # (C, CNN_W, CNN_H)
    return out


if __name__ == "__main__":
    key = jax.random.PRNGKey(0)
    im_h, im_w = 48, 64                                  # small synthetic image (H, W, C)
    im = jax.random.uniform(key, (im_h, im_w, CNN_C), dtype=jnp.float32) * 255.0
    rects = np.array([[5, 3, 30, 20],                    # [x, y, w, h]
                      [20, 10, 40, 25]], dtype=np.int32)

    imT_cached = preprocess_image(im)                    # cache across calls
    out = image_warp(im, rects, imT_padded=imT_cached)
    out = jax.block_until_ready(out)

    ref = _reference_numpy(np.asarray(im), rects)
    np.testing.assert_allclose(np.asarray(out), ref, rtol=1e-5, atol=1e-4)
    assert out.shape == (len(rects), CNN_C, CNN_W, CNN_H)
    print("KERNEL_OK")
</pallas_src>

<mosaic_0001>
module attributes {stable_mosaic.version = 11 : i64} {
  func.func @kernel(%arg0: i32, %arg1: memref<2xi32, #tpu.memory_space<smem>>, %arg2: memref<2xi32, #tpu.memory_space<smem>>, %arg3: memref<1x232x1xi32, #tpu.memory_space<vmem>>, %arg4: memref<1x1x256xi32, #tpu.memory_space<vmem>>, %arg5: memref<3x64x128xf32, #tpu.memory_space<any>>, %arg6: memref<1x3x232x256xf32, #tpu.memory_space<vmem>>, %arg7: memref<2x64x128xf32, #tpu.memory_space<vmem>>, %arg8: memref<64x768xf32, #tpu.memory_space<vmem>>, %arg9: memref<2x!tpu.dma_semaphore, #tpu.memory_space<semaphore_mem>>) attributes {dimension_semantics = [#tpu.dimension_semantics<parallel>], iteration_bounds = array<i64: 2>, scalar_prefetch = 2 : i64, scratch_operands = 3 : i64, tpu.core_type = #tpu.core_type<tc>, window_params = [{transform_indices = @transform_0, window_bounds = array<i64: 1, 232, 1>}, {transform_indices = @transform_1, window_bounds = array<i64: 1, 1, 256>}, {}, {transform_indices = @transform_3, window_bounds = array<i64: 1, 3, 232, 256>}]} {
    %0 = arith.index_cast %arg0 : i32 to index
    %1 = memref.load %arg1[%0] : memref<2xi32, #tpu.memory_space<smem>>
    %2 = tpu.assume_multiple %1, 8 : i32
    %3 = arith.index_cast %arg0 : i32 to index
    %4 = memref.load %arg2[%3] : memref<2xi32, #tpu.memory_space<smem>>
    %5 = tpu.assume_multiple %4, 128 : i32
    %c0_i32 = arith.constant 0 : i32
    %c0_i32_0 = arith.constant 0 : i32
    %c0_i32_1 = arith.constant 0 : i32
    %6 = tpu.memref_slice %arg5[%c0_i32, %2, %5] : memref<3x64x128xf32, #tpu.memory_space<any>> -> memref<1x64x128xf32, #tpu.memory_space<any>>
    %7 = tpu.memref_squeeze %6 : memref<1x64x128xf32, #tpu.memory_space<any>> -> memref<64x128xf32, #tpu.memory_space<any>>
    %c0_i32_2 = arith.constant 0 : i32
    %c0_i32_3 = arith.constant 0 : i32
    %8 = tpu.memref_slice %arg7[%c0_i32_0, %c0_i32_2, %c0_i32_3] : memref<2x64x128xf32, #tpu.memory_space<vmem>> -> memref<1x64x128xf32, #tpu.memory_space<vmem>>
    %9 = tpu.memref_squeeze %8 : memref<1x64x128xf32, #tpu.memory_space<vmem>> -> memref<64x128xf32, #tpu.memory_space<vmem>>
    %10 = tpu.memref_slice %arg9[%c0_i32_1] : memref<2x!tpu.dma_semaphore, #tpu.memory_space<semaphore_mem>> -> memref<1x!tpu.dma_semaphore, #tpu.memory_space<semaphore_mem>>
    %11 = tpu.memref_squeeze %10 : memref<1x!tpu.dma_semaphore, #tpu.memory_space<semaphore_mem>> -> memref<!tpu.dma_semaphore, #tpu.memory_space<semaphore_mem>>
    tpu.enqueue_dma source(%7 : memref<64x128xf32, #tpu.memory_space<any>>) target(%9 : memref<64x128xf32, #tpu.memory_space<vmem>>) target_semaphore(%11 : memref<!tpu.dma_semaphore, #tpu.memory_space<semaphore_mem>>)
    %c1_i32 = arith.constant 1 : i32
    %c1_i32_4 = arith.constant 1 : i32
    %c1_i32_5 = arith.constant 1 : i32
    %12 = tpu.memref_slice %arg5[%c1_i32, %2, %5] : memref<3x64x128xf32, #tpu.memory_space<any>> -> memref<1x64x128xf32, #tpu.memory_space<any>>
    %13 = tpu.memref_squeeze %12 : memref<1x64x128xf32, #tpu.memory_space<any>> -> memref<64x128xf32, #tpu.memory_space<any>>
    %c0_i32_6 = arith.constant 0 : i32
    %c0_i32_7 = arith.constant 0 : i32
    %14 = tpu.memref_slice %arg7[%c1_i32_4, %c0_i32_6, %c0_i32_7] : memref<2x64x128xf32, #tpu.memory_space<vmem>> -> memref<1x64x128xf32, #tpu.memory_space<vmem>>
    %15 = tpu.memref_squeeze %14 : memref<1x64x128xf32, #tpu.memory_space<vmem>> -> memref<64x128xf32, #tpu.memory_space<vmem>>
    %16 = tpu.memref_slice %arg9[%c1_i32_5] : memref<2x!tpu.dma_semaphore, #tpu.memory_space<semaphore_mem>> -> memref<1x!tpu.dma_semaphore, #tpu.memory_space<semaphore_mem>>
    %17 = tpu.memref_squeeze %16 : memref<1x!tpu.dma_semaphore, #tpu.memory_space<semaphore_mem>> -> memref<!tpu.dma_semaphore, #tpu.memory_space<semaphore_mem>>
    tpu.enqueue_dma source(%13 : memref<64x128xf32, #tpu.memory_space<any>>) target(%15 : memref<64x128xf32, #tpu.memory_space<vmem>>) target_semaphore(%17 : memref<!tpu.dma_semaphore, #tpu.memory_space<semaphore_mem>>)
    %c0 = arith.constant 0 : index
    %c0_8 = arith.constant 0 : index
    %c0_9 = arith.constant 0 : index
    %18 = vector.load %arg3[%c0, %c0_8, %c0_9] : memref<1x232x1xi32, #tpu.memory_space<vmem>>, vector<1x232x1xi32>
    %19 = vector.shape_cast %18 : vector<1x232x1xi32> to vector<232x1xi32>
    %c0_10 = arith.constant 0 : index
    %c0_11 = arith.constant 0 : index
    %c0_12 = arith.constant 0 : index
    %20 = vector.load %arg4[%c0_10, %c0_11, %c0_12] : memref<1x1x256xi32, #tpu.memory_space<vmem>>, vector<1x1x256xi32>
    %21 = vector.shape_cast %20 : vector<1x1x256xi32> to vector<1x256xi32>
    %22 = tpu.iota {dimensions = array<i32: 1>} : vector<232x64xi32>
    %23 = vector.broadcast %19 : vector<232x1xi32> to vector<232x64xi32>
    %24 = arith.cmpi eq, %22, %23 : vector<232x64xi32>
    %25 = arith.extui %24 : vector<232x64xi1> to vector<232x64xi32>
    %26 = arith.sitofp %25 : vector<232x64xi32> to vector<232x64xf32>
    %27 = tpu.iota {dimensions = array<i32: 0>} : vector<128x256xi32>
    %28 = vector.broadcast %21 : vector<1x256xi32> to vector<128x256xi32>
    %29 = arith.cmpi eq, %27, %28 : vector<128x256xi32>
    %30 = arith.extui %29 : vector<128x256xi1> to vector<128x256xi32>
    %31 = arith.sitofp %30 : vector<128x256xi32> to vector<128x256xf32>
    %c0_i32_13 = arith.constant 0 : i32
    %c0_i32_14 = arith.constant 0 : i32
    %c0_i32_15 = arith.constant 0 : i32
    %32 = tpu.memref_slice %arg5[%c0_i32_13, %2, %5] : memref<3x64x128xf32, #tpu.memory_space<any>> -> memref<1x64x128xf32, #tpu.memory_space<any>>
    %33 = tpu.memref_squeeze %32 : memref<1x64x128xf32, #tpu.memory_space<any>> -> memref<64x128xf32, #tpu.memory_space<any>>
    %c0_i32_16 = arith.constant 0 : i32
    %c0_i32_17 = arith.constant 0 : i32
    %34 = tpu.memref_slice %arg7[%c0_i32_14, %c0_i32_16, %c0_i32_17] : memref<2x64x128xf32, #tpu.memory_space<vmem>> -> memref<1x64x128xf32, #tpu.memory_space<vmem>>
    %35 = tpu.memref_squeeze %34 : memref<1x64x128xf32, #tpu.memory_space<vmem>> -> memref<64x128xf32, #tpu.memory_space<vmem>>
    %36 = tpu.memref_slice %arg9[%c0_i32_15] : memref<2x!tpu.dma_semaphore, #tpu.memory_space<semaphore_mem>> -> memref<1x!tpu.dma_semaphore, #tpu.memory_space<semaphore_mem>>
    %37 = tpu.memref_squeeze %36 : memref<1x!tpu.dma_semaphore, #tpu.memory_space<semaphore_mem>> -> memref<!tpu.dma_semaphore, #tpu.memory_space<semaphore_mem>>
    tpu.wait_dma2 semaphore(%37 : memref<!tpu.dma_semaphore, #tpu.memory_space<semaphore_mem>>) src(%33 : memref<64x128xf32, #tpu.memory_space<any>>) dst(%35 : memref<64x128xf32, #tpu.memory_space<vmem>>)
    %c0_18 = arith.constant 0 : index
    %c0_19 = arith.constant 0 : index
    %c0_20 = arith.constant 0 : index
    %38 = vector.load %arg7[%c0_18, %c0_19, %c0_20] : memref<2x64x128xf32, #tpu.memory_space<vmem>>, vector<1x64x128xf32>
    %39 = vector.shape_cast %38 : vector<1x64x128xf32> to vector<64x128xf32>
    %cst = arith.constant dense<0.000000e+00> : vector<64x256xf32>
    %40 = tpu.matmul %39, %31, %cst {dimension_numbers = #tpu.dot_dimension_numbers<[1], [0], [0], [1], [0, 0, 1, 1], [], []>} : vector<64x128xf32>, vector<128x256xf32>, vector<64x256xf32> -> vector<64x256xf32>
    %c0_21 = arith.constant 0 : index
    %c0_22 = arith.constant 0 : index
    %41 = vector.load %arg8[%c0_21, %c0_22] : memref<64x768xf32, #tpu.memory_space<vmem>>, vector<64x256xf32>
    tpu.vector_store %arg8[%c0_21, %c0_22], %40 {strides = array<i32>} : memref<64x768xf32, #tpu.memory_space<vmem>>, vector<64x256xf32>,
    %c2_i32 = arith.constant 2 : i32
    %c0_i32_23 = arith.constant 0 : i32
    %c0_i32_24 = arith.constant 0 : i32
    %42 = tpu.memref_slice %arg5[%c2_i32, %2, %5] : memref<3x64x128xf32, #tpu.memory_space<any>> -> memref<1x64x128xf32, #tpu.memory_space<any>>
    %43 = tpu.memref_squeeze %42 : memref<1x64x128xf32, #tpu.memory_space<any>> -> memref<64x128xf32, #tpu.memory_space<any>>
    %c0_i32_25 = arith.constant 0 : i32
    %c0_i32_26 = arith.constant 0 : i32
    %44 = tpu.memref_slice %arg7[%c0_i32_23, %c0_i32_25, %c0_i32_26] : memref<2x64x128xf32, #tpu.memory_space<vmem>> -> memref<1x64x128xf32, #tpu.memory_space<vmem>>
    %45 = tpu.memref_squeeze %44 : memref<1x64x128xf32, #tpu.memory_space<vmem>> -> memref<64x128xf32, #tpu.memory_space<vmem>>
    %46 = tpu.memref_slice %arg9[%c0_i32_24] : memref<2x!tpu.dma_semaphore, #tpu.memory_space<semaphore_mem>> -> memref<1x!tpu.dma_semaphore, #tpu.memory_space<semaphore_mem>>
    %47 = tpu.memref_squeeze %46 : memref<1x!tpu.dma_semaphore, #tpu.memory_space<semaphore_mem>> -> memref<!tpu.dma_semaphore, #tpu.memory_space<semaphore_mem>>
    tpu.enqueue_dma source(%43 : memref<64x128xf32, #tpu.memory_space<any>>) target(%45 : memref<64x128xf32, #tpu.memory_space<vmem>>) target_semaphore(%47 : memref<!tpu.dma_semaphore, #tpu.memory_space<semaphore_mem>>)
    %c1_i32_27 = arith.constant 1 : i32
    %c1_i32_28 = arith.constant 1 : i32
    %c1_i32_29 = arith.constant 1 : i32
    %48 = tpu.memref_slice %arg5[%c1_i32_27, %2, %5] : memref<3x64x128xf32, #tpu.memory_space<any>> -> memref<1x64x128xf32, #tpu.memory_space<any>>
    %49 = tpu.memref_squeeze %48 : memref<1x64x128xf32, #tpu.memory_space<any>> -> memref<64x128xf32, #tpu.memory_space<any>>
    %c0_i32_30 = arith.constant 0 : i32
    %c0_i32_31 = arith.constant 0 : i32
    %50 = tpu.memref_slice %arg7[%c1_i32_28, %c0_i32_30, %c0_i32_31] : memref<2x64x128xf32, #tpu.memory_space<vmem>> -> memref<1x64x128xf32, #tpu.memory_space<vmem>>
    %51 = tpu.memref_squeeze %50 : memref<1x64x128xf32, #tpu.memory_space<vmem>> -> memref<64x128xf32, #tpu.memory_space<vmem>>
    %52 = tpu.memref_slice %arg9[%c1_i32_29] : memref<2x!tpu.dma_semaphore, #tpu.memory_space<semaphore_mem>> -> memref<1x!tpu.dma_semaphore, #tpu.memory_space<semaphore_mem>>
    %53 = tpu.memref_squeeze %52 : memref<1x!tpu.dma_semaphore, #tpu.memory_space<semaphore_mem>> -> memref<!tpu.dma_semaphore, #tpu.memory_space<semaphore_mem>>
    tpu.wait_dma2 semaphore(%53 : memref<!tpu.dma_semaphore, #tpu.memory_space<semaphore_mem>>) src(%49 : memref<64x128xf32, #tpu.memory_space<any>>) dst(%51 : memref<64x128xf32, #tpu.memory_space<vmem>>)
    %c1 = arith.constant 1 : index
    %c0_32 = arith.constant 0 : index
    %c0_33 = arith.constant 0 : index
    %54 = vector.load %arg7[%c1, %c0_32, %c0_33] : memref<2x64x128xf32, #tpu.memory_space<vmem>>, vector<1x64x128xf32>
    %55 = vector.shape_cast %54 : vector<1x64x128xf32> to vector<64x128xf32>
    %cst_34 = arith.constant dense<0.000000e+00> : vector<64x256xf32>
    %56 = tpu.matmul %55, %31, %cst_34 {dimension_numbers = #tpu.dot_dimension_numbers<[1], [0], [0], [1], [0, 0, 1, 1], [], []>} : vector<64x128xf32>, vector<128x256xf32>, vector<64x256xf32> -> vector<64x256xf32>
    %c0_35 = arith.constant 0 : index
    %c256 = arith.constant 256 : index
    %57 = vector.load %arg8[%c0_35, %c256] : memref<64x768xf32, #tpu.memory_space<vmem>>, vector<64x256xf32>
    tpu.vector_store %arg8[%c0_35, %c256], %56 {strides = array<i32>} : memref<64x768xf32, #tpu.memory_space<vmem>>, vector<64x256xf32>,
    %c2_i32_36 = arith.constant 2 : i32
    %c0_i32_37 = arith.constant 0 : i32
    %c0_i32_38 = arith.constant 0 : i32
    %58 = tpu.memref_slice %arg5[%c2_i32_36, %2, %5] : memref<3x64x128xf32, #tpu.memory_space<any>> -> memref<1x64x128xf32, #tpu.memory_space<any>>
    %59 = tpu.memref_squeeze %58 : memref<1x64x128xf32, #tpu.memory_space<any>> -> memref<64x128xf32, #tpu.memory_space<any>>
    %c0_i32_39 = arith.constant 0 : i32
    %c0_i32_40 = arith.constant 0 : i32
    %60 = tpu.memref_slice %arg7[%c0_i32_37, %c0_i32_39, %c0_i32_40] : memref<2x64x128xf32, #tpu.memory_space<vmem>> -> memref<1x64x128xf32, #tpu.memory_space<vmem>>
    %61 = tpu.memref_squeeze %60 : memref<1x64x128xf32, #tpu.memory_space<vmem>> -> memref<64x128xf32, #tpu.memory_space<vmem>>
    %62 = tpu.memref_slice %arg9[%c0_i32_38] : memref<2x!tpu.dma_semaphore, #tpu.memory_space<semaphore_mem>> -> memref<1x!tpu.dma_semaphore, #tpu.memory_space<semaphore_mem>>
    %63 = tpu.memref_squeeze %62 : memref<1x!tpu.dma_semaphore, #tpu.memory_space<semaphore_mem>> -> memref<!tpu.dma_semaphore, #tpu.memory_space<semaphore_mem>>
    tpu.wait_dma2 semaphore(%63 : memref<!tpu.dma_semaphore, #tpu.memory_space<semaphore_mem>>) src(%59 : memref<64x128xf32, #tpu.memory_space<any>>) dst(%61 : memref<64x128xf32, #tpu.memory_space<vmem>>)
    %c0_41 = arith.constant 0 : index
    %c0_42 = arith.constant 0 : index
    %c0_43 = arith.constant 0 : index
    %64 = vector.load %arg7[%c0_41, %c0_42, %c0_43] : memref<2x64x128xf32, #tpu.memory_space<vmem>>, vector<1x64x128xf32>
    %65 = vector.shape_cast %64 : vector<1x64x128xf32> to vector<64x128xf32>
    %cst_44 = arith.constant dense<0.000000e+00> : vector<64x256xf32>
    %66 = tpu.matmul %65, %31, %cst_44 {dimension_numbers = #tpu.dot_dimension_numbers<[1], [0], [0], [1], [0, 0, 1, 1], [], []>} : vector<64x128xf32>, vector<128x256xf32>, vector<64x256xf32> -> vector<64x256xf32>
    %c0_45 = arith.constant 0 : index
    %c512 = arith.constant 512 : index
    %67 = vector.load %arg8[%c0_45, %c512] : memref<64x768xf32, #tpu.memory_space<vmem>>, vector<64x256xf32>
    tpu.vector_store %arg8[%c0_45, %c512], %66 {strides = array<i32>} : memref<64x768xf32, #tpu.memory_space<vmem>>, vector<64x256xf32>,
    %c0_46 = arith.constant 0 : index
    %c0_47 = arith.constant 0 : index
    %68 = vector.load %arg8[%c0_46, %c0_47] : memref<64x768xf32, #tpu.memory_space<vmem>>, vector<64x768xf32>
    %cst_48 = arith.constant dense<0.000000e+00> : vector<232x768xf32>
    %69 = tpu.matmul %26, %68, %cst_48 {dimension_numbers = #tpu.dot_dimension_numbers<[1], [0], [0], [1], [0, 0, 1, 1], [], []>} : vector<232x64xf32>, vector<64x768xf32>, vector<232x768xf32> -> vector<232x768xf32>
    %70 = vector.extract_strided_slice %69 {offsets = [0, 0], sizes = [232, 256], strides = [1, 1]} : vector<232x768xf32> to vector<232x256xf32>
    %c0_49 = arith.constant 0 : index
    %c0_50 = arith.constant 0 : index
    %c0_51 = arith.constant 0 : index
    %c0_52 = arith.constant 0 : index
    %71 = vector.load %arg6[%c0_49, %c0_50, %c0_51, %c0_52] : memref<1x3x232x256xf32, #tpu.memory_space<vmem>>, vector<1x1x232x256xf32>
    %72 = vector.shape_cast %71 : vector<1x1x232x256xf32> to vector<232x256xf32>
    %73 = vector.shape_cast %70 : vector<232x256xf32> to vector<1x1x232x256xf32>
    tpu.vector_store %arg6[%c0_49, %c0_50, %c0_51, %c0_52], %73 {strides = array<i32>} : memref<1x3x232x256xf32, #tpu.memory_space<vmem>>, vector<1x1x232x256xf32>,
    %74 = vector.extract_strided_slice %69 {offsets = [0, 256], sizes = [232, 256], strides = [1, 1]} : vector<232x768xf32> to vector<232x256xf32>
    %c0_53 = arith.constant 0 : index
    %c1_54 = arith.constant 1 : index
    %c0_55 = arith.constant 0 : index
    %c0_56 = arith.constant 0 : index
    %75 = vector.load %arg6[%c0_53, %c1_54, %c0_55, %c0_56] : memref<1x3x232x256xf32, #tpu.memory_space<vmem>>, vector<1x1x232x256xf32>
    %76 = vector.shape_cast %75 : vector<1x1x232x256xf32> to vector<232x256xf32>
    %77 = vector.shape_cast %74 : vector<232x256xf32> to vector<1x1x232x256xf32>
    tpu.vector_store %arg6[%c0_53, %c1_54, %c0_55, %c0_56], %77 {strides = array<i32>} : memref<1x3x232x256xf32, #tpu.memory_space<vmem>>, vector<1x1x232x256xf32>,
    %78 = vector.extract_strided_slice %69 {offsets = [0, 512], sizes = [232, 256], strides = [1, 1]} : vector<232x768xf32> to vector<232x256xf32>
    %c0_57 = arith.constant 0 : index
    %c2 = arith.constant 2 : index
    %c0_58 = arith.constant 0 : index
    %c0_59 = arith.constant 0 : index
    %79 = vector.load %arg6[%c0_57, %c2, %c0_58, %c0_59] : memref<1x3x232x256xf32, #tpu.memory_space<vmem>>, vector<1x1x232x256xf32>
    %80 = vector.shape_cast %79 : vector<1x1x232x256xf32> to vector<232x256xf32>
    %81 = vector.shape_cast %78 : vector<232x256xf32> to vector<1x1x232x256xf32>
    tpu.vector_store %arg6[%c0_57, %c2, %c0_58, %c0_59], %81 {strides = array<i32>} : memref<1x3x232x256xf32, #tpu.memory_space<vmem>>, vector<1x1x232x256xf32>,
    return
  }
  func.func @transform_0(%arg0: i32, %arg1: memref<2xi32, #tpu.memory_space<smem>>, %arg2: memref<2xi32, #tpu.memory_space<smem>>) -> (i32, i32, i32) {
    %c0_i32 = arith.constant 0 : i32
    %c0_i32_0 = arith.constant 0 : i32
    %c0_i32_1 = arith.constant 0 : i32
    return %arg0, %c0_i32, %c0_i32_0 : i32, i32, i32
  }
  func.func @transform_1(%arg0: i32, %arg1: memref<2xi32, #tpu.memory_space<smem>>, %arg2: memref<2xi32, #tpu.memory_space<smem>>) -> (i32, i32, i32) {
    %c0_i32 = arith.constant 0 : i32
    %c0_i32_0 = arith.constant 0 : i32
    %c0_i32_1 = arith.constant 0 : i32
    return %arg0, %c0_i32, %c0_i32_0 : i32, i32, i32
  }
  func.func @transform_3(%arg0: i32, %arg1: memref<2xi32, #tpu.memory_space<smem>>, %arg2: memref<2xi32, #tpu.memory_space<smem>>) -> (i32, i32, i32, i32) {
    %c0_i32 = arith.constant 0 : i32
    %c0_i32_0 = arith.constant 0 : i32
    %c0_i32_1 = arith.constant 0 : i32
    %c0_i32_2 = arith.constant 0 : i32
    return %arg0, %c0_i32, %c0_i32_0, %c0_i32_1 : i32, i32, i32, i32
  }
}

</mosaic_0001>

<llo_original>
// kernel: tpu_custom_call.1
$region0: #{tpu_custom_call.1}
  #allocation0 [shape = 'u32[]', space=smem, size = 0x4, offset = 0x4, fixed_abs, tag = 'smem constant byte address 0x4 - core index']
  #allocation1 [shape = 'u32[72,128]{1,0:T(1,128)}', space=vmem, size = 0x9000, scoped, tag = 'internal scratch']
  #allocation2 [shape = 'f32[2,64,128]{2,1,0:T(8,128)}', space=vmem, size = 0x10000, scoped, tag = 'scratch operand']
  #allocation3 [shape = 'f32[64,768]{1,0:T(8,128)}', space=vmem, size = 0x30000, scoped, tag = 'scratch operand']
  #allocation4 [shape = 's32[2]{0}', space=sflag, size = 0x8, scoped, tag = 'scratch operand']
  #allocation5 [shape = 's32[1]{0}', space=sflag, size = 0x4, scoped, tag = 'scoped memory for tpu_custom_call.1']
  #allocation6 [shape = 'u8[512]{0}', space=smem, size = 0x200, scoped, tag = 'prefetched SMEM operand 0']
  #allocation7 [shape = 'u8[512]{0}', space=smem, size = 0x200, scoped, tag = 'prefetched SMEM operand 1']
  #allocation12 [shape = 's32[]', space=sflag, size = 0x4, offset = 0, fixed_abs, tag = 'sflag constant byte address 0x0 - dummy sync flag']
  #allocation13 [shape = 's32[]', space=sflag, size = 0x4, offset = 0, fixed_abs, tag = 'sflag constant byte address 0x0 - dummy sync flag']
  #allocation14 [shape = 'u32[]', space=smem, size = 0x4, offset = 0x44, fixed_abs, tag = 'smem constant byte address 0x44 - assertion arg 0']
  #allocation15 [shape = 'u32[]', space=smem, size = 0x4, offset = 0x48, fixed_abs, tag = 'smem constant byte address 0x48 - assertion arg 1']
  #allocation16 [shape = 's32[]', space=sflag, size = 0x4, offset = 0, fixed_abs, tag = 'sflag constant byte address 0x0 - dummy sync flag']
  #allocation17 [shape = 's32[]', space=sflag, size = 0x4, offset = 0, fixed_abs, tag = 'sflag constant byte address 0x0 - dummy sync flag']
  #allocation18 [shape = 's32[]', space=sflag, size = 0x4, offset = 0, fixed_abs, tag = 'sflag constant byte address 0x0 - dummy sync flag']
  #allocation19 [shape = 's32[]', space=sflag, size = 0x4, offset = 0, fixed_abs, tag = 'sflag constant byte address 0x0 - dummy sync flag']
  %s0 = inlined_call_operand.hbm [shape: s32[2], index: 0, kind: input, shape index: {}]
  %s1 = inlined_call_operand.hbm [shape: s32[2], index: 1, kind: input, shape index: {}]
  %s2 = inlined_call_operand.vmem [shape: s32[2,232,1], index: 2, kind: input, shape index: {}]
  %s3 = inlined_call_operand.hbm [shape: s32[2,1,256], index: 3, kind: input, shape index: {}]
  %s4 = inlined_call_operand.hbm [shape: f32[3,64,128], index: 4, kind: input, shape index: {}]
  %s5 = inlined_call_operand.hbm [shape: f32[2,3,232,256], index: 5, kind: output, shape index: {}]
  %s6 = sld [smem:[#allocation0]]
  $region57: #{tpu_custom_call.1} parent=0
    _
  %s8 = ssub.s32 1, %s6
  %s9 = scalar_select 0, %s8, %s6
  %s11 = sshll.u32 %s0, 4
  %s12 = int_to_ptr.hbm [resolvable:$true] %s11
  %14 = dma.hbm_to_smem %s12, 16, [#allocation6], [#allocation5]
  %s16 = sshll.u32 %s1, 4
  %s17 = int_to_ptr.hbm [resolvable:$true] %s16
  %19 = dma.hbm_to_smem %s17, 16, [#allocation7], [#allocation5]
  %21 = dma.done [#allocation5], 32
  %22 = sfence
  $region1: #{tpu_custom_call.1} parent=0
    #allocation8 [shape = 'u8[2048]{0}', space=vmem, size = 0x800, scoped, tag = 'input window, operand 3']
    #allocation9 [shape = 's32[2]{0}', space=sflag, size = 0x8, scoped, tag = 'scoped memory for tpu_custom_call.1']
    #allocation10 [shape = 's32[2]{0}', space=sflag, size = 0x8, scoped, tag = 'scoped memory for tpu_custom_call.1']
    #allocation11 [shape = 'u8[1425408]{0}', space=vmem, size = 0x15c000, scoped, tag = 'output window, operand 0']
    %23 = vsyncpa [#allocation9], 0
    %s24 = scalar_lea.sflag [#allocation9], 1
    %25 = vsyncpa %s24, 0
    %26 = vsyncpa [#allocation10], 0
    %s27 = scalar_lea.sflag [#allocation10], 1
    %28 = vsyncpa %s27, 0
    loop: start=0, step=1, limit=4
    $region2: #{tpu_custom_call.1} parent=1 // loop_pre_header
      _
    $region3: #{tpu_custom_call.1} parent=1 // loop_header
      %s30 = sphi 0, %s34
      %p31 = scmp.ge.s32.totalorder %s30, 4
      %s40 = sphi 0, %s42
      %s43 = sphi 0, %s40
      %s44 = sphi 0, %s43
      %s60 = sphi 0, %s44
      %s66 = sphi 0, %s68
      %s69 = sphi 0, %s66
      %s70 = sphi 0, %s69
      %s86 = sphi 0, %s70
      %s92 = sphi 0, %s94
      %s95 = sphi 0, %s92
      %s96 = sphi 0, %s95
      %s112 = sphi 0, %s96
    $region4: #{tpu_custom_call.1} parent=1 // loop_header_branch
      %33 = sbr.rel (%p31) target = $region8
    $region5: #{tpu_custom_call.1} parent=1 // loop_body
      %s35 = ssub.s32 %s30, 1
      %s36 = ssub.s32 %s30, 2
      %s37 = sadd.s32 %s30, 1
      %s38 = ssub.s32 %s30, %s37
      %p39 = scmp.eq.s32.totalorder %s38, 0
      %s41 = sadd.s32 %s40, 1
      %s42 = scalar_select %p39, %s40, %s41
      %p45 = pneg %p39
      %p46 = scmp.eq.s32.totalorder %s30, 1
      %p47 = por %p45, %p46
      %p48 = scmp.ne.s32.totalorder %s40, %s43
      %p49 = scmp.eq.s32.totalorder %s30, 0
      %p50 = por %p48, %p49
      %p51 = scmp.ne.s32.totalorder %s40, %s43
      %p52 = scmp.eq.s32.totalorder %s35, 1
      %p53 = por %p51, %p52
      %p54 = scmp.ne.s32.totalorder %s43, %s44
      %p55 = scmp.eq.s32.totalorder %s35, 0
      %p56 = por %p54, %p55
      %p57 = scmp.ne.s32.totalorder %s43, %s44
      %p58 = scmp.eq.s32.totalorder %s36, 1
      %p59 = por %p57, %p58
      %p61 = scmp.ne.s32.totalorder %s44, %s60
      %p62 = scmp.eq.s32.totalorder %s36, 0
      %p63 = por %p61, %p62
      %s64 = ssub.s32 %s30, %s37
      %p65 = scmp.eq.s32.totalorder %s64, 0
      %s67 = sadd.s32 %s66, 1
      %s68 = scalar_select %p65, %s66, %s67
      %p71 = pneg %p65
      %p72 = scmp.eq.s32.totalorder %s30, 1
      %p73 = por %p71, %p72
      %p74 = scmp.ne.s32.totalorder %s66, %s69
      %p75 = scmp.eq.s32.totalorder %s30, 0
      %p76 = por %p74, %p75
      %p77 = scmp.ne.s32.totalorder %s66, %s69
      %p78 = scmp.eq.s32.totalorder %s35, 1
      %p79 = por %p77, %p78
      %p80 = scmp.ne.s32.totalorder %s69, %s70
      %p81 = scmp.eq.s32.totalorder %s35, 0
      %p82 = por %p80, %p81
      %p83 = scmp.ne.s32.totalorder %s69, %s70
      %p84 = scmp.eq.s32.totalorder %s36, 1
      %p85 = por %p83, %p84
      %p87 = scmp.ne.s32.totalorder %s70, %s86
      %p88 = scmp.eq.s32.totalorder %s36, 0
      %p89 = por %p87, %p88
      %s90 = ssub.s32 %s30, %s37
      %p91 = scmp.eq.s32.totalorder %s90, 0
      %s93 = sadd.s32 %s92, 1
      %s94 = scalar_select %p91, %s92, %s93
      %p97 = pneg %p91
      %p98 = scmp.eq.s32.totalorder %s30, 1
      %p99 = por %p97, %p98
      %p100 = scmp.ne.s32.totalorder %s92, %s95
      %p101 = scmp.eq.s32.totalorder %s30, 0
      %p102 = por %p100, %p101
      %p103 = scmp.ne.s32.totalorder %s92, %s95
      %p104 = scmp.eq.s32.totalorder %s35, 1
      %p105 = por %p103, %p104
      %p106 = scmp.ne.s32.totalorder %s95, %s96
      %p107 = scmp.eq.s32.totalorder %s35, 0
      %p108 = por %p106, %p107
      %p109 = scmp.ne.s32.totalorder %s95, %s96
      %p110 = scmp.eq.s32.totalorder %s36, 1
      %p111 = por %p109, %p110
      %p113 = scmp.ne.s32.totalorder %s96, %s112
      %p114 = scmp.eq.s32.totalorder %s36, 0
      %p115 = por %p113, %p114
      %p116 = scmp.le.s32.totalorder 1, %s30
      %p117 = scmp.lt.s32.totalorder %s30, 3
      %p118 = pnand %p116, %p117
      %p119 = pneg %p118
      // Predicated region
      $region9: #{tpu_custom_call.1} parent=5 // pred_check
        _
      $region10: #{tpu_custom_call.1} parent=5 // pred_check_branch
        %121 = sbr.rel (%p118) target = $region12
      $region11: #{tpu_custom_call.1} parent=5 // pred_region
        %s122 = ssub.s32 %s30, 1
      $region12: #{tpu_custom_call.1} parent=5 // pred_fallthru
        _
      %p123 = scmp.lt.s32.totalorder %s30, 2
      // Predicated region
      $region13: #{tpu_custom_call.1} parent=5 // pred_check
        %p124 = pneg %p123
      $region14: #{tpu_custom_call.1} parent=5 // pred_check_branch
        %126 = sbr.rel (%p124) target = $region16
      $region15: #{tpu_custom_call.1} parent=5 // pred_region
        // Predicated region
        $region17: #{tpu_custom_call.1} parent=15 // pred_check
          %p127 = pneg %p50
        $region18: #{tpu_custom_call.1} parent=15 // pred_check_branch
          %129 = sbr.rel (%p127) target = $region20
        $region19: #{tpu_custom_call.1} parent=15 // pred_region
          %p130 = scmp.lt.s32.totalorder %s30, 1
          %s131 = scalar_select %p130, %s30, 1
          %s132 = smul.addr %s131, 29
          %s133 = smul.addr %s132, 8
          %s134 = scalar_lea.vmem %s2, %s133
        $region20: #{tpu_custom_call.1} parent=15 // pred_fallthru
          _
        // Predicated region
        $region21: #{tpu_custom_call.1} parent=15 // pred_check
          %p135 = pneg %p76
        $region22: #{tpu_custom_call.1} parent=15 // pred_check_branch
          %137 = sbr.rel (%p135) target = $region24
        $region23: #{tpu_custom_call.1} parent=15 // pred_region
          %s138 = sand.u32 %s66, 1
          %s139 = scalar_lea.sflag [#allocation9], %s138
          %s140 = sand.u32 %s66, 1
          %s141 = smul.addr %s140, 2
          %s142 = scalar_lea.vmem [#allocation8], %s141
          %144 = vsyncadd %s139, 0
          %s145 = smul.addr %s30, 2
          %s146 = scalar_lea.hbm %s3, %s145
          %s148 = sshll.u32 %s146, 4
          %s149 = int_to_ptr.hbm [resolvable:$true] %s148
          %s150 = sshll.u32 %s142, 4
          %s151 = int_to_ptr.vmem [resolvable:$true] %s150
          %153 = dma.hbm_to_vmem [thread:$0]  %s149, 32, %s151, %s139
        $region24: #{tpu_custom_call.1} parent=15 // pred_fallthru
          _
      $region16: #{tpu_custom_call.1} parent=5 // pred_fallthru
        _
      %p154 = scmp.le.s32.totalorder 1, %s30
      %p155 = scmp.lt.s32.totalorder %s30, 3
      %p156 = pnand %p154, %p155
      %p157 = pneg %p156
      // Predicated region
      $region25: #{tpu_custom_call.1} parent=5 // pred_check
        _
      $region26: #{tpu_custom_call.1} parent=5 // pred_check_branch
        %159 = sbr.rel (%p156) target = $region28
      $region27: #{tpu_custom_call.1} parent=5 // pred_region
        %s160 = ssub.s32 %s30, 1
        %s161 = sand.u32 %s69, 1
        %s162 = scalar_lea.sflag [#allocation9], %s161
        %s163 = sand.u32 %s69, 1
        %s164 = smul.addr %s163, 2
        %s165 = scalar_lea.vmem [#allocation8], %s164
        // Predicated region
        $region29: #{tpu_custom_call.1} parent=27 // pred_check
          %p166 = pneg %p82
        $region30: #{tpu_custom_call.1} parent=27 // pred_check_branch
          %168 = sbr.rel (%p166) target = $region32
        $region31: #{tpu_custom_call.1} parent=27 // pred_region
          %170 = dma.done %s162, 32
        $region32: #{tpu_custom_call.1} parent=27 // pred_fallthru
          _
        %p171 = scmp.lt.s32.totalorder %s35, 1
        %s172 = scalar_select %p171, %s35, 1
        %s173 = smul.addr %s172, 29
        %s174 = smul.addr %s173, 8
        %s175 = scalar_lea.vmem %s2, %s174
        %p176 = pneg %p56
        %p177 = pneg %p53
        %s178 = sand.u32 %s69, 1
        %s179 = scalar_lea.sflag [#allocation9], %s178
        %s180 = sand.u32 %s69, 1
        %s181 = smul.addr %s180, 2
        %s182 = scalar_lea.vmem [#allocation8], %s181
        %p183 = pneg %p82
        %p184 = pneg %p79
        %p185 = pneg %p108
        %p186 = pneg %p105
        %s187 = sand.u32 %s95, 1
        %s188 = scalar_lea.sflag [#allocation10], %s187
        %s189 = sand.u32 %s95, 1
        %s190 = smul.addr %s189, 1392
        %s191 = scalar_lea.vmem [#allocation11], %s190
        %p192 = scmp.lt.s32.totalorder %s35, 1
        %s193 = scalar_select %p192, %s35, 1
        %s194 = smul.addr %s193, 29
        %s195 = smul.addr %s194, 8
        %s196 = scalar_lea.vmem %s2, %s195
        %s197 = sld [smem:[#allocation6 + %s35]]
        %s198 = sld [smem:[#allocation7 + %s35]]
        %s199 = sshra.s32 %s198, 7
        %s200 = sand.u32 %s198, 127
        %s201 = sadd.s32 %s199, %s197
        %s202 = scalar_lea.hbm %s4, %s201
        // Predicated region
        $region33: #{tpu_custom_call.1} parent=27 // pred_check
          _
        $region34: #{tpu_custom_call.1} parent=27 // pred_check_branch
          %204 = sbr.rel target = $region36
        $region35: #{tpu_custom_call.1} parent=27 // pred_region
          %205 = sst [smem:[#allocation14]] [#allocation13]
          %206 = sst [smem:[#allocation15]] [#allocation12]
        $region36: #{tpu_custom_call.1} parent=27 // pred_fallthru
          _
        %208 = shalt.err (0)
        %s210 = sshll.u32 %s202, 4
        %s211 = int_to_ptr.hbm [resolvable:$true] %s210
        %s212 = sshll.u32 [#allocation2], 4
        %s213 = int_to_ptr.vmem [resolvable:$true] %s212
        %215 = dma.hbm_to_vmem [thread:$0]  %s211, 1024, %s213, [#allocation4]
        %s216 = sadd.s32 %s201, 64
        %s217 = scalar_lea.hbm %s4, %s216
        %s218 = scalar_lea.vmem [#allocation2], 64
        %s219 = scalar_lea.sflag [#allocation4], 1
        // Predicated region
        $region37: #{tpu_custom_call.1} parent=27 // pred_check
          _
        $region38: #{tpu_custom_call.1} parent=27 // pred_check_branch
          %221 = sbr.rel target = $region40
        $region39: #{tpu_custom_call.1} parent=27 // pred_region
          %222 = sst [smem:[#allocation14]] [#allocation17]
          %223 = sst [smem:[#allocation15]] [#allocation16]
        $region40: #{tpu_custom_call.1} parent=27 // pred_fallthru
          _
        %225 = shalt.err (0)
        %s227 = sshll.u32 %s217, 4
        %s228 = int_to_ptr.hbm [resolvable:$true] %s227
        %s229 = sshll.u32 %s218, 4
        %s230 = int_to_ptr.vmem [resolvable:$true] %s229
        %232 = dma.hbm_to_vmem [thread:$0]  %s228, 1024, %s230, %s219
        %v233 = vld [vmem:[%s196] sm:$0xff]
        %v234 = vld [vmem:[%s196 + $0x8] sm:$0xff]
        %v235 = vld [vmem:[%s196 + $0x10] sm:$0xff]
        %v236 = vld [vmem:[%s196 + $0x18] sm:$0xff]
        %v237 = vld [vmem:[%s196 + $0x20] sm:$0xff]
        %v238 = vld [vmem:[%s196 + $0x28] sm:$0xff]
        %v239 = vld [vmem:[%s196 + $0x30] sm:$0xff]
        %v240 = vld [vmem:[%s196 + $0x38] sm:$0xff]
        %v241 = vld [vmem:[%s196 + $0x40] sm:$0xff]
        %v242 = vld [vmem:[%s196 + $0x48] sm:$0xff]
        %v243 = vld [vmem:[%s196 + $0x50] sm:$0xff]
        %v244 = vld [vmem:[%s196 + $0x58] sm:$0xff]
        %v245 = vld [vmem:[%s196 + $0x60] sm:$0xff]
        %v246 = vld [vmem:[%s196 + $0x68] sm:$0xff]
        %v247 = vld [vmem:[%s196 + $0x70] sm:$0xff]
        %v248 = vld [vmem:[%s196 + $0x78] sm:$0xff]
        %v249 = vld [vmem:[%s196 + $0x80] sm:$0xff]
        %v250 = vld [vmem:[%s196 + $0x88] sm:$0xff]
        %v251 = vld [vmem:[%s196 + $0x90] sm:$0xff]
        %v252 = vld [vmem:[%s196 + $0x98] sm:$0xff]
        %v253 = vld [vmem:[%s196 + $0xa0] sm:$0xff]
        %v254 = vld [vmem:[%s196 + $0xa8] sm:$0xff]
        %v255 = vld [vmem:[%s196 + $0xb0] sm:$0xff]
        %v256 = vld [vmem:[%s196 + $0xb8] sm:$0xff]
        %v257 = vld [vmem:[%s196 + $0xc0] sm:$0xff]
        %v258 = vld [vmem:[%s196 + $0xc8] sm:$0xff]
        %v259 = vld [vmem:[%s196 + $0xd0] sm:$0xff]
        %v260 = vld [vmem:[%s196 + $0xd8] sm:$0xff]
        %v261 = vld [vmem:[%s196 + $0xe0] sm:$0xff]
        %v262 = vld [vmem:[%s165] sm:$0x3]
        %v263 = vlaneseq
        %v264 = vand.u32 %v263, 127
        %265 = vset.pattern.permute.xlu0 0
        %266 = vperm.xlu0 %265, %v233
        %v267 = vpop.permute.xlu0 %266
        %268 = vset.pattern.permute.xlu0 0
        %269 = vperm.xlu0 %268, %v234
        %v270 = vpop.permute.xlu0 %269
        %271 = vset.pattern.permute.xlu0 0
        %272 = vperm.xlu0 %271, %v235
        %v273 = vpop.permute.xlu0 %272
        %274 = vset.pattern.permute.xlu0 0
        %275 = vperm.xlu0 %274, %v236
        %v276 = vpop.permute.xlu0 %275
        %277 = vset.pattern.permute.xlu0 0
        %278 = vperm.xlu0 %277, %v237
        %v279 = vpop.permute.xlu0 %278
        %280 = vset.pattern.permute.xlu0 0
        %281 = vperm.xlu0 %280, %v238
        %v282 = vpop.permute.xlu0 %281
        %283 = vset.pattern.permute.xlu0 0
        %284 = vperm.xlu0 %283, %v239
        %v285 = vpop.permute.xlu0 %284
        %286 = vset.pattern.permute.xlu0 0
        %287 = vperm.xlu0 %286, %v240
        %v288 = vpop.permute.xlu0 %287
        %289 = vset.pattern.permute.xlu0 0
        %290 = vperm.xlu0 %289, %v241
        %v291 = vpop.permute.xlu0 %290
        %292 = vset.pattern.permute.xlu0 0
        %293 = vperm.xlu0 %292, %v242
        %v294 = vpop.permute.xlu0 %293
        %295 = vset.pattern.permute.xlu0 0
        %296 = vperm.xlu0 %295, %v243
        %v297 = vpop.permute.xlu0 %296
        %298 = vset.pattern.permute.xlu0 0
        %299 = vperm.xlu0 %298, %v244
        %v300 = vpop.permute.xlu0 %299
        %301 = vset.pattern.permute.xlu0 0
        %302 = vperm.xlu0 %301, %v245
        %v303 = vpop.permute.xlu0 %302
        %304 = vset.pattern.permute.xlu0 0
        %305 = vperm.xlu0 %304, %v246
        %v306 = vpop.permute.xlu0 %305
        %307 = vset.pattern.permute.xlu0 0
        %308 = vperm.xlu0 %307, %v247
        %v309 = vpop.permute.xlu0 %308
        %310 = vset.pattern.permute.xlu0 0
        %311 = vperm.xlu0 %310, %v248
        %v312 = vpop.permute.xlu0 %311
        %313 = vset.pattern.permute.xlu0 0
        %314 = vperm.xlu0 %313, %v249
        %v315 = vpop.permute.xlu0 %314
        %316 = vset.pattern.permute.xlu0 0
        %317 = vperm.xlu0 %316, %v250
        %v318 = vpop.permute.xlu0 %317
        %319 = vset.pattern.permute.xlu0 0
        %320 = vperm.xlu0 %319, %v251
        %v321 = vpop.permute.xlu0 %320
        %322 = vset.pattern.permute.xlu0 0
        %323 = vperm.xlu0 %322, %v252
        %v324 = vpop.permute.xlu0 %323
        %325 = vset.pattern.permute.xlu0 0
        %326 = vperm.xlu0 %325, %v253
        %v327 = vpop.permute.xlu0 %326
        %328 = vset.pattern.permute.xlu0 0
        %329 = vperm.xlu0 %328, %v254
        %v330 = vpop.permute.xlu0 %329
        %331 = vset.pattern.permute.xlu0 0
        %332 = vperm.xlu0 %331, %v255
        %v333 = vpop.permute.xlu0 %332
        %334 = vset.pattern.permute.xlu0 0
        %335 = vperm.xlu0 %334, %v256
        %v336 = vpop.permute.xlu0 %335
        %337 = vset.pattern.permute.xlu0 0
        %338 = vperm.xlu0 %337, %v257
        %v339 = vpop.permute.xlu0 %338
        %340 = vset.pattern.permute.xlu0 0
        %341 = vperm.xlu0 %340, %v258
        %v342 = vpop.permute.xlu0 %341
        %343 = vset.pattern.permute.xlu0 0
        %344 = vperm.xlu0 %343, %v259
        %v345 = vpop.permute.xlu0 %344
        %346 = vset.pattern.permute.xlu0 0
        %347 = vperm.xlu0 %346, %v260
        %v348 = vpop.permute.xlu0 %347
        %349 = vset.pattern.permute.xlu0 0
        %350 = vperm.xlu0 %349, %v261
        %v351 = vpop.permute.xlu0 %350
        %vm352 = vcmp.eq.s32.totalorder %v264, %v267
        %vm353 = vcmp.eq.s32.totalorder %v264, %v270
        %vm354 = vcmp.eq.s32.totalorder %v264, %v273
        %vm355 = vcmp.eq.s32.totalorder %v264, %v276
        %vm356 = vcmp.eq.s32.totalorder %v264, %v279
        %vm357 = vcmp.eq.s32.totalorder %v264, %v282
        %vm358 = vcmp.eq.s32.totalorder %v264, %v285
        %vm359 = vcmp.eq.s32.totalorder %v264, %v288
        %vm360 = vcmp.eq.s32.totalorder %v264, %v291
        %vm361 = vcmp.eq.s32.totalorder %v264, %v294
        %vm362 = vcmp.eq.s32.totalorder %v264, %v297
        %vm363 = vcmp.eq.s32.totalorder %v264, %v300
        %vm364 = vcmp.eq.s32.totalorder %v264, %v303
        %vm365 = vcmp.eq.s32.totalorder %v264, %v306
        %vm366 = vcmp.eq.s32.totalorder %v264, %v309
        %vm367 = vcmp.eq.s32.totalorder %v264, %v312
        %vm368 = vcmp.eq.s32.totalorder %v264, %v315
        %vm369 = vcmp.eq.s32.totalorder %v264, %v318
        %vm370 = vcmp.eq.s32.totalorder %v264, %v321
        %vm371 = vcmp.eq.s32.totalorder %v264, %v324
        %vm372 = vcmp.eq.s32.totalorder %v264, %v327
        %vm373 = vcmp.eq.s32.totalorder %v264, %v330
        %vm374 = vcmp.eq.s32.totalorder %v264, %v333
        %vm375 = vcmp.eq.s32.totalorder %v264, %v336
        %vm376 = vcmp.eq.s32.totalorder %v264, %v339
        %vm377 = vcmp.eq.s32.totalorder %v264, %v342
        %vm378 = vcmp.eq.s32.totalorder %v264, %v345
        %vm379 = vcmp.eq.s32.totalorder %v264, %v348
        %vm380 = vcmp.eq.s32.totalorder %v264, %v351
        %v381 = vsel %vm352, 1, 0
        %v382 = vsel %vm353, 1, 0
        %v383 = vsel %vm354, 1, 0
        %v384 = vsel %vm355, 1, 0
        %v385 = vsel %vm356, 1, 0
        %v386 = vsel %vm357, 1, 0
        %v387 = vsel %vm358, 1, 0
        %v388 = vsel %vm359, 1, 0
        %v389 = vsel %vm360, 1, 0
        %v390 = vsel %vm361, 1, 0
        %v391 = vsel %vm362, 1, 0
        %v392 = vsel %vm363, 1, 0
        %v393 = vsel %vm364, 1, 0
        %v394 = vsel %vm365, 1, 0
        %v395 = vsel %vm366, 1, 0
        %v396 = vsel %vm367, 1, 0
        %v397 = vsel %vm368, 1, 0
        %v398 = vsel %vm369, 1, 0
        %v399 = vsel %vm370, 1, 0
        %v400 = vsel %vm371, 1, 0
        %v401 = vsel %vm372, 1, 0
        %v402 = vsel %vm373, 1, 0
        %v403 = vsel %vm374, 1, 0
        %v404 = vsel %vm375, 1, 0
        %v405 = vsel %vm376, 1, 0
        %v406 = vsel %vm377, 1, 0
        %v407 = vsel %vm378, 1, 0
        %v408 = vsel %vm379, 1, 0
        %v409 = vsel %vm380, 1, 0
        %v410 = vcvt.s32.f32 %v381
        %v411 = vcvt.s32.f32 %v382
        %v412 = vcvt.s32.f32 %v383
        %v413 = vcvt.s32.f32 %v384
        %v414 = vcvt.s32.f32 %v385
        %v415 = vcvt.s32.f32 %v386
        %v416 = vcvt.s32.f32 %v387
        %v417 = vcvt.s32.f32 %v388
        %v418 = vcvt.s32.f32 %v389
        %v419 = vcvt.s32.f32 %v390
        %v420 = vcvt.s32.f32 %v391
        %v421 = vcvt.s32.f32 %v392
        %v422 = vcvt.s32.f32 %v393
        %v423 = vcvt.s32.f32 %v394
        %v424 = vcvt.s32.f32 %v395
        %v425 = vcvt.s32.f32 %v396
        %v426 = vcvt.s32.f32 %v397
        %v427 = vcvt.s32.f32 %v398
        %v428 = vcvt.s32.f32 %v399
        %v429 = vcvt.s32.f32 %v400
        %v430 = vcvt.s32.f32 %v401
        %v431 = vcvt.s32.f32 %v402
        %v432 = vcvt.s32.f32 %v403
        %v433 = vcvt.s32.f32 %v404
        %v434 = vcvt.s32.f32 %v405
        %v435 = vcvt.s32.f32 %v406
        %v436 = vcvt.s32.f32 %v407
        %v437 = vcvt.s32.f32 %v408
        %v438 = vcvt.s32.f32 %v409
        %v439 = vlaneseq
        %v440 = vshrl.u32 %v439, 7
        %v441 = vadd.s32 %v440, 8
        %v442 = vadd.s32 %v440, 16
        %v443 = vadd.s32 %v440, 24
        %v444 = vadd.s32 %v440, 32
        %v445 = vadd.s32 %v440, 40
        %v446 = vadd.s32 %v440, 48
        %v447 = vadd.s32 %v440, 56
        %v448 = vadd.s32 %v440, 64
        %v449 = vadd.s32 %v440, 72
        %v450 = vadd.s32 %v440, 80
        %v451 = vadd.s32 %v440, 88
        %v452 = vadd.s32 %v440, 96
        %v453 = vadd.s32 %v440, 104
        %v454 = vadd.s32 %v440, 112
        %v455 = vadd.s32 %v440, 120
        %v456 = vperm.slane %v262, 0
        %v457 = vperm.slane %v262, 1
        %vm458 = vcmp.eq.s32.totalorder %v440, %v456
        %vm459 = vcmp.eq.s32.totalorder %v440, %v457
        %vm460 = vcmp.eq.s32.totalorder %v441, %v456
        %vm461 = vcmp.eq.s32.totalorder %v441, %v457
        %vm462 = vcmp.eq.s32.totalorder %v442, %v456
        %vm463 = vcmp.eq.s32.totalorder %v442, %v457
        %vm464 = vcmp.eq.s32.totalorder %v443, %v456
        %vm465 = vcmp.eq.s32.totalorder %v443, %v457
        %vm466 = vcmp.eq.s32.totalorder %v444, %v456
        %vm467 = vcmp.eq.s32.totalorder %v444, %v457
        %vm468 = vcmp.eq.s32.totalorder %v445, %v456
        %vm469 = vcmp.eq.s32.totalorder %v445, %v457
        %vm470 = vcmp.eq.s32.totalorder %v446, %v456
        %vm471 = vcmp.eq.s32.totalorder %v446, %v457
        %vm472 = vcmp.eq.s32.totalorder %v447, %v456
        %vm473 = vcmp.eq.s32.totalorder %v447, %v457
        %vm474 = vcmp.eq.s32.totalorder %v448, %v456
        %vm475 = vcmp.eq.s32.totalorder %v448, %v457
        %vm476 = vcmp.eq.s32.totalorder %v449, %v456
        %vm477 = vcmp.eq.s32.totalorder %v449, %v457
        %vm478 = vcmp.eq.s32.totalorder %v450, %v456
        %vm479 = vcmp.eq.s32.totalorder %v450, %v457
        %vm480 = vcmp.eq.s32.totalorder %v451, %v456
        %vm481 = vcmp.eq.s32.totalorder %v451, %v457
        %vm482 = vcmp.eq.s32.totalorder %v452, %v456
        %vm483 = vcmp.eq.s32.totalorder %v452, %v457
        %vm484 = vcmp.eq.s32.totalorder %v453, %v456
        %vm485 = vcmp.eq.s32.totalorder %v453, %v457
        %vm486 = vcmp.eq.s32.totalorder %v454, %v456
        %vm487 = vcmp.eq.s32.totalorder %v454, %v457
        %vm488 = vcmp.eq.s32.totalorder %v455, %v456
        %vm489 = vcmp.eq.s32.totalorder %v455, %v457
        %v490 = vsel %vm458, 1, 0
        %v491 = vsel %vm459, 1, 0
        %v492 = vsel %vm460, 1, 0
        %v493 = vsel %vm461, 1, 0
        %v494 = vsel %vm462, 1, 0
        %v495 = vsel %vm463, 1, 0
        %v496 = vsel %vm464, 1, 0
        %v497 = vsel %vm465, 1, 0
        %v498 = vsel %vm466, 1, 0
        %v499 = vsel %vm467, 1, 0
        %v500 = vsel %vm468, 1, 0
        %v501 = vsel %vm469, 1, 0
        %v502 = vsel %vm470, 1, 0
        %v503 = vsel %vm471, 1, 0
        %v504 = vsel %vm472, 1, 0
        %v505 = vsel %vm473, 1, 0
        %v506 = vsel %vm474, 1, 0
        %v507 = vsel %vm475, 1, 0
        %v508 = vsel %vm476, 1, 0
        %v509 = vsel %vm477, 1, 0
        %v510 = vsel %vm478, 1, 0
        %v511 = vsel %vm479, 1, 0
        %v512 = vsel %vm480, 1, 0
        %v513 = vsel %vm481, 1, 0
        %v514 = vsel %vm482, 1, 0
        %v515 = vsel %vm483, 1, 0
        %v516 = vsel %vm484, 1, 0
        %v517 = vsel %vm485, 1, 0
        %v518 = vsel %vm486, 1, 0
        %v519 = vsel %vm487, 1, 0
        %v520 = vsel %vm488, 1, 0
        %v521 = vsel %vm489, 1, 0
        %v522 = vcvt.s32.f32 %v490
        %v523 = vcvt.s32.f32 %v491
        %v524 = vcvt.s32.f32 %v492
        %v525 = vcvt.s32.f32 %v493
        %v526 = vcvt.s32.f32 %v494
        %v527 = vcvt.s32.f32 %v495
        %v528 = vcvt.s32.f32 %v496
        %v529 = vcvt.s32.f32 %v497
        %v530 = vcvt.s32.f32 %v498
        %v531 = vcvt.s32.f32 %v499
        %v532 = vcvt.s32.f32 %v500
        %v533 = vcvt.s32.f32 %v501
        %v534 = vcvt.s32.f32 %v502
        %v535 = vcvt.s32.f32 %v503
        %v536 = vcvt.s32.f32 %v504
        %v537 = vcvt.s32.f32 %v505
        %v538 = vcvt.s32.f32 %v506
        %v539 = vcvt.s32.f32 %v507
        %v540 = vcvt.s32.f32 %v508
        %v541 = vcvt.s32.f32 %v509
        %v542 = vcvt.s32.f32 %v510
        %v543 = vcvt.s32.f32 %v511
        %v544 = vcvt.s32.f32 %v512
        %v545 = vcvt.s32.f32 %v513
        %v546 = vcvt.s32.f32 %v514
        %v547 = vcvt.s32.f32 %v515
        %v548 = vcvt.s32.f32 %v516
        %v549 = vcvt.s32.f32 %v517
        %v550 = vcvt.s32.f32 %v518
        %v551 = vcvt.s32.f32 %v519
        %v552 = vcvt.s32.f32 %v520
        %v553 = vcvt.s32.f32 %v521
        %s554 = smul.u32 64, 1
        %s555 = sshll.u32 %s554, 4
        %556 = dma.done [#allocation4], %s555
        %v557 = vld [vmem:[#allocation2] sm:$0xff]
        %v558 = vld [vmem:[#allocation2 + $0x8] sm:$0xff]
        %v559 = vld [vmem:[#allocation2 + $0x10] sm:$0xff]
        %v560 = vld [vmem:[#allocation2 + $0x18] sm:$0xff]
        %v561 = vld [vmem:[#allocation2 + $0x20] sm:$0xff]
        %v562 = vld [vmem:[#allocation2 + $0x28] sm:$0xff]
        %v563 = vld [vmem:[#allocation2 + $0x30] sm:$0xff]
        %v564 = vld [vmem:[#allocation2 + $0x38] sm:$0xff]
        %565 = vmatpush.msra.mxu0 %v552
        %566 = vmatpush.msra.mxu0 %v550
        %567 = vmatpush.msra.mxu0 %v548
        %568 = vmatpush.msra.mxu0 %v546
        %569 = vmatpush.msra.mxu0 %v544
        %570 = vmatpush.msra.mxu0 %v542
        %571 = vmatpush.msra.mxu0 %v540
        %572 = vmatpush.msra.mxu0 %v538
        %573 = vmatpush.msra.mxu0 %v536
        %574 = vmatpush.msra.mxu0 %v534
        %575 = vmatpush.msra.mxu0 %v532
        %576 = vmatpush.msra.mxu0 %v530
        %577 = vmatpush.msra.mxu0 %v528
        %578 = vmatpush.msra.mxu0 %v526
        %579 = vmatpush.msra.mxu0 %v524
        %580 = vmatpush.msra.mxu0 %v522
        %581 = vmatmul.f32.gmra.mxu0 %v557
        %v582 = vpop.f32.mrf.mxu0
        %v583 = vadd.f32 0.0, %v582
        %584 = vmatmul.f32.gmra.mxu0 %v558
        %v585 = vpop.f32.mrf.mxu0
        %v586 = vadd.f32 0.0, %v585
        %587 = vmatmul.f32.gmra.mxu0 %v559
        %v588 = vpop.f32.mrf.mxu0
        %v589 = vadd.f32 0.0, %v588
        %590 = vmatmul.f32.gmra.mxu0 %v560
        %v591 = vpop.f32.mrf.mxu0
        %v592 = vadd.f32 0.0, %v591
        %593 = vmatmul.f32.gmra.mxu0 %v561
        %v594 = vpop.f32.mrf.mxu0
        %v595 = vadd.f32 0.0, %v594
        %596 = vmatmul.f32.gmra.mxu0 %v562
        %v597 = vpop.f32.mrf.mxu0
        %v598 = vadd.f32 0.0, %v597
        %599 = vmatmul.f32.gmra.mxu0 %v563
        %v600 = vpop.f32.mrf.mxu0
        %v601 = vadd.f32 0.0, %v600
        %602 = vmatmul.f32.gmra.mxu0 %v564
        %v603 = vpop.f32.mrf.mxu0
        %v604 = vadd.f32 0.0, %v603
        %605 = vdwg.mxu0
        %606 = vmatpush.msra.mxu0 %v553
        %607 = vmatpush.msra.mxu0 %v551
        %608 = vmatpush.msra.mxu0 %v549
        %609 = vmatpush.msra.mxu0 %v547
        %610 = vmatpush.msra.mxu0 %v545
        %611 = vmatpush.msra.mxu0 %v543
        %612 = vmatpush.msra.mxu0 %v541
        %613 = vmatpush.msra.mxu0 %v539
        %614 = vmatpush.msra.mxu0 %v537
        %615 = vmatpush.msra.mxu0 %v535
        %616 = vmatpush.msra.mxu0 %v533
        %617 = vmatpush.msra.mxu0 %v531
        %618 = vmatpush.msra.mxu0 %v529
        %619 = vmatpush.msra.mxu0 %v527
        %620 = vmatpush.msra.mxu0 %v525
        %621 = vmatpush.msra.mxu0 %v523
        %622 = vmatmul.f32.gmra.mxu0 %v557
        %v623 = vpop.f32.mrf.mxu0
        %v624 = vadd.f32 0.0, %v623
        %625 = vmatmul.f32.gmra.mxu0 %v558
        %v626 = vpop.f32.mrf.mxu0
        %v627 = vadd.f32 0.0, %v626
        %628 = vmatmul.f32.gmra.mxu0 %v559
        %v629 = vpop.f32.mrf.mxu0
        %v630 = vadd.f32 0.0, %v629
        %631 = vmatmul.f32.gmra.mxu0 %v560
        %v632 = vpop.f32.mrf.mxu0
        %v633 = vadd.f32 0.0, %v632
        %634 = vmatmul.f32.gmra.mxu0 %v561
        %v635 = vpop.f32.mrf.mxu0
        %v636 = vadd.f32 0.0, %v635
        %637 = vmatmul.f32.gmra.mxu0 %v562
        %v638 = vpop.f32.mrf.mxu0
        %v639 = vadd.f32 0.0, %v638
        %640 = vmatmul.f32.gmra.mxu0 %v563
        %v641 = vpop.f32.mrf.mxu0
        %v642 = vadd.f32 0.0, %v641
        %643 = vmatmul.f32.gmra.mxu0 %v564
        %v644 = vpop.f32.mrf.mxu0
        %v645 = vadd.f32 0.0, %v644
        %646 = vdwg.mxu0
        %647 = vst [vmem:[#allocation3] sm:$0xff] %v583
        %648 = vst [vmem:[#allocation3 + $0x8] sm:$0xff] %v624
        %649 = vst [vmem:[#allocation3 + $0x30] sm:$0xff] %v586
        %650 = vst [vmem:[#allocation3 + $0x38] sm:$0xff] %v627
        %651 = vst [vmem:[#allocation3 + $0x60] sm:$0xff] %v589
        %652 = vst [vmem:[#allocation3 + $0x68] sm:$0xff] %v630
        %653 = vst [vmem:[#allocation3 + $0x90] sm:$0xff] %v592
        %654 = vst [vmem:[#allocation3 + $0x98] sm:$0xff] %v633
        %655 = vst [vmem:[#allocation3 + $0xc0] sm:$0xff] %v595
        %656 = vst [vmem:[#allocation3 + $0xc8] sm:$0xff] %v636
        %657 = vst [vmem:[#allocation3 + $0xf0] sm:$0xff] %v598
        %658 = vst [vmem:[#allocation3 + $0xf8] sm:$0xff] %v639
        %659 = vst [vmem:[#allocation3 + $0x120] sm:$0xff] %v601
        %660 = vst [vmem:[#allocation3 + $0x128] sm:$0xff] %v642
        %661 = vst [vmem:[#allocation3 + $0x150] sm:$0xff] %v604
        %662 = vst [vmem:[#allocation3 + $0x158] sm:$0xff] %v645
        %s663 = sadd.s32 %s201, 128
        %s664 = scalar_lea.hbm %s4, %s663
        // Predicated region
        $region41: #{tpu_custom_call.1} parent=27 // pred_check
          _
        $region42: #{tpu_custom_call.1} parent=27 // pred_check_branch
          %666 = sbr.rel target = $region44
        $region43: #{tpu_custom_call.1} parent=27 // pred_region
          %667 = sst [smem:[#allocation14]] [#allocation19]
          %668 = sst [smem:[#allocation15]] [#allocation18]
        $region44: #{tpu_custom_call.1} parent=27 // pred_fallthru
          _
        %670 = shalt.err (0)
        %s672 = sshll.u32 %s664, 4
        %s673 = int_to_ptr.hbm [resolvable:$true] %s672
        %s674 = sshll.u32 [#allocation2], 4
        %s675 = int_to_ptr.vmem [resolvable:$true] %s674
        %677 = dma.hbm_to_vmem [thread:$0]  %s673, 1024, %s675, [#allocation4]
        %s678 = sshll.u32 %s554, 4
        %679 = dma.done %s219, %s678
        %v680 = vld [vmem:[%s218] sm:$0xff]
        %v681 = vld [vmem:[%s218 + $0x8] sm:$0xff]
        %v682 = vld [vmem:[%s218 + $0x10] sm:$0xff]
        %v683 = vld [vmem:[%s218 + $0x18] sm:$0xff]
        %v684 = vld [vmem:[%s218 + $0x20] sm:$0xff]
        %v685 = vld [vmem:[%s218 + $0x28] sm:$0xff]
        %v686 = vld [vmem:[%s218 + $0x30] sm:$0xff]
        %v687 = vld [vmem:[%s218 + $0x38] sm:$0xff]
        %688 = vmatpush.msra.mxu0 %v552
        %689 = vmatpush.msra.mxu0 %v550
        %690 = vmatpush.msra.mxu0 %v548
        %691 = vmatpush.msra.mxu0 %v546
        %692 = vmatpush.msra.mxu0 %v544
        %693 = vmatpush.msra.mxu0 %v542
        %694 = vmatpush.msra.mxu0 %v540
        %695 = vmatpush.msra.mxu0 %v538
        %696 = vmatpush.msra.mxu0 %v536
        %697 = vmatpush.msra.mxu0 %v534
        %698 = vmatpush.msra.mxu0 %v532
        %699 = vmatpush.msra.mxu0 %v530
        %700 = vmatpush.msra.mxu0 %v528
        %701 = vmatpush.msra.mxu0 %v526
        %702 = vmatpush.msra.mxu0 %v524
        %703 = vmatpush.msra.mxu0 %v522
        %704 = vmatmul.f32.gmra.mxu0 %v680
        %v705 = vpop.f32.mrf.mxu0
        %v706 = vadd.f32 0.0, %v705
        %707 = vmatmul.f32.gmra.mxu0 %v681
        %v708 = vpop.f32.mrf.mxu0
        %v709 = vadd.f32 0.0, %v708
        %710 = vmatmul.f32.gmra.mxu0 %v682
        %v711 = vpop.f32.mrf.mxu0
        %v712 = vadd.f32 0.0, %v711
        %713 = vmatmul.f32.gmra.mxu0 %v683
        %v714 = vpop.f32.mrf.mxu0
        %v715 = vadd.f32 0.0, %v714
        %716 = vmatmul.f32.gmra.mxu0 %v684
        %v717 = vpop.f32.mrf.mxu0
        %v718 = vadd.f32 0.0, %v717
        %719 = vmatmul.f32.gmra.mxu0 %v685
        %v720 = vpop.f32.mrf.mxu0
        %v721 = vadd.f32 0.0, %v720
        %722 = vmatmul.f32.gmra.mxu0 %v686
        %v723 = vpop.f32.mrf.mxu0
        %v724 = vadd.f32 0.0, %v723
        %725 = vmatmul.f32.gmra.mxu0 %v687
        %v726 = vpop.f32.mrf.mxu0
        %v727 = vadd.f32 0.0, %v726
        %728 = vdwg.mxu0
        %729 = vmatpush.msra.mxu0 %v553
        %730 = vmatpush.msra.mxu0 %v551
        %731 = vmatpush.msra.mxu0 %v549
        %732 = vmatpush.msra.mxu0 %v547
        %733 = vmatpush.msra.mxu0 %v545
        %734 = vmatpush.msra.mxu0 %v543
        %735 = vmatpush.msra.mxu0 %v541
        %736 = vmatpush.msra.mxu0 %v539
        %737 = vmatpush.msra.mxu0 %v537
        %738 = vmatpush.msra.mxu0 %v535
        %739 = vmatpush.msra.mxu0 %v533
        %740 = vmatpush.msra.mxu0 %v531
        %741 = vmatpush.msra.mxu0 %v529
        %742 = vmatpush.msra.mxu0 %v527
        %743 = vmatpush.msra.mxu0 %v525
        %744 = vmatpush.msra.mxu0 %v523
        %745 = vmatmul.f32.gmra.mxu0 %v680
        %v746 = vpop.f32.mrf.mxu0
        %v747 = vadd.f32 0.0, %v746
        %748 = vmatmul.f32.gmra.mxu0 %v681
        %v749 = vpop.f32.mrf.mxu0
        %v750 = vadd.f32 0.0, %v749
        %751 = vmatmul.f32.gmra.mxu0 %v682
        %v752 = vpop.f32.mrf.mxu0
        %v753 = vadd.f32 0.0, %v752
        %754 = vmatmul.f32.gmra.mxu0 %v683
        %v755 = vpop.f32.mrf.mxu0
        %v756 = vadd.f32 0.0, %v755
        %757 = vmatmul.f32.gmra.mxu0 %v684
        %v758 = vpop.f32.mrf.mxu0
        %v759 = vadd.f32 0.0, %v758
        %760 = vmatmul.f32.gmra.mxu0 %v685
        %v761 = vpop.f32.mrf.mxu0
        %v762 = vadd.f32 0.0, %v761
        %763 = vmatmul.f32.gmra.mxu0 %v686
        %v764 = vpop.f32.mrf.mxu0
        %v765 = vadd.f32 0.0, %v764
        %766 = vmatmul.f32.gmra.mxu0 %v687
        %v767 = vpop.f32.mrf.mxu0
        %v768 = vadd.f32 0.0, %v767
        %769 = vdwg.mxu0
        %770 = vst [vmem:[#allocation3 + $0x10] sm:$0xff] %v706
        %771 = vst [vmem:[#allocation3 + $0x18] sm:$0xff] %v747
        %772 = vst [vmem:[#allocation3 + $0x40] sm:$0xff] %v709
        %773 = vst [vmem:[#allocation3 + $0x48] sm:$0xff] %v750
        %774 = vst [vmem:[#allocation3 + $0x70] sm:$0xff] %v712
        %775 = vst [vmem:[#allocation3 + $0x78] sm:$0xff] %v753
        %776 = vst [vmem:[#allocation3 + $0xa0] sm:$0xff] %v715
        %777 = vst [vmem:[#allocation3 + $0xa8] sm:$0xff] %v756
        %778 = vst [vmem:[#allocation3 + $0xd0] sm:$0xff] %v718
        %779 = vst [vmem:[#allocation3 + $0xd8] sm:$0xff] %v759
        %780 = vst [vmem:[#allocation3 + $0x100] sm:$0xff] %v721
        %781 = vst [vmem:[#allocation3 + $0x108] sm:$0xff] %v762
        %782 = vst [vmem:[#allocation3 + $0x130] sm:$0xff] %v724
        %783 = vst [vmem:[#allocation3 + $0x138] sm:$0xff] %v765
        %784 = vst [vmem:[#allocation3 + $0x160] sm:$0xff] %v727
        %785 = vst [vmem:[#allocation3 + $0x168] sm:$0xff] %v768
        %s786 = sshll.u32 %s554, 4
        %787 = dma.done [#allocation4], %s786
        %v788 = vld [vmem:[#allocation2] sm:$0xff]
        %v789 = vld [vmem:[#allocation2 + $0x8] sm:$0xff]
        %v790 = vld [vmem:[#allocation2 + $0x10] sm:$0xff]
        %v791 = vld [vmem:[#allocation2 + $0x18] sm:$0xff]
        %v792 = vld [vmem:[#allocation2 + $0x20] sm:$0xff]
        %v793 = vld [vmem:[#allocation2 + $0x28] sm:$0xff]
        %v794 = vld [vmem:[#allocation2 + $0x30] sm:$0xff]
        %v795 = vld [vmem:[#allocation2 + $0x38] sm:$0xff]
        %796 = vmatpush.msra.mxu0 %v552
        %797 = vmatpush.msra.mxu0 %v550
        %798 = vmatpush.msra.mxu0 %v548
        %799 = vmatpush.msra.mxu0 %v546
        %800 = vmatpush.msra.mxu0 %v544
        %801 = vmatpush.msra.mxu0 %v542
        %802 = vmatpush.msra.mxu0 %v540
        %803 = vmatpush.msra.mxu0 %v538
        %804 = vmatpush.msra.mxu0 %v536
        %805 = vmatpush.msra.mxu0 %v534
        %806 = vmatpush.msra.mxu0 %v532
        %807 = vmatpush.msra.mxu0 %v530
        %808 = vmatpush.msra.mxu0 %v528
        %809 = vmatpush.msra.mxu0 %v526
        %810 = vmatpush.msra.mxu0 %v524
        %811 = vmatpush.msra.mxu0 %v522
        %812 = vmatmul.f32.gmra.mxu0 %v788
        %v813 = vpop.f32.mrf.mxu0
        %v814 = vadd.f32 0.0, %v813
        %815 = vmatmul.f32.gmra.mxu0 %v789
        %v816 = vpop.f32.mrf.mxu0
        %v817 = vadd.f32 0.0, %v816
        %818 = vmatmul.f32.gmra.mxu0 %v790
        %v819 = vpop.f32.mrf.mxu0
        %v820 = vadd.f32 0.0, %v819
        %821 = vmatmul.f32.gmra.mxu0 %v791
        %v822 = vpop.f32.mrf.mxu0
        %v823 = vadd.f32 0.0, %v822
        %824 = vmatmul.f32.gmra.mxu0 %v792
        %v825 = vpop.f32.mrf.mxu0
        %v826 = vadd.f32 0.0, %v825
        %827 = vmatmul.f32.gmra.mxu0 %v793
        %v828 = vpop.f32.mrf.mxu0
        %v829 = vadd.f32 0.0, %v828
        %830 = vmatmul.f32.gmra.mxu0 %v794
        %v831 = vpop.f32.mrf.mxu0
        %v832 = vadd.f32 0.0, %v831
        %833 = vmatmul.f32.gmra.mxu0 %v795
        %v834 = vpop.f32.mrf.mxu0
        %v835 = vadd.f32 0.0, %v834
        %836 = vdwg.mxu0
        %837 = vmatpush.msra.mxu0 %v553
        %838 = vmatpush.msra.mxu0 %v551
        %839 = vmatpush.msra.mxu0 %v549
        %840 = vmatpush.msra.mxu0 %v547
        %841 = vmatpush.msra.mxu0 %v545
        %842 = vmatpush.msra.mxu0 %v543
        %843 = vmatpush.msra.mxu0 %v541
        %844 = vmatpush.msra.mxu0 %v539
        %845 = vmatpush.msra.mxu0 %v537
        %846 = vmatpush.msra.mxu0 %v535
        %847 = vmatpush.msra.mxu0 %v533
        %848 = vmatpush.msra.mxu0 %v531
        %849 = vmatpush.msra.mxu0 %v529
        %850 = vmatpush.msra.mxu0 %v527
        %851 = vmatpush.msra.mxu0 %v525
        %852 = vmatpush.msra.mxu0 %v523
        %853 = vmatmul.f32.gmra.mxu0 %v788
        %v854 = vpop.f32.mrf.mxu0
        %v855 = vadd.f32 0.0, %v854
        %856 = vmatmul.f32.gmra.mxu0 %v789
        %v857 = vpop.f32.mrf.mxu0
        %v858 = vadd.f32 0.0, %v857
        %859 = vmatmul.f32.gmra.mxu0 %v790
        %v860 = vpop.f32.mrf.mxu0
        %v861 = vadd.f32 0.0, %v860
        %862 = vmatmul.f32.gmra.mxu0 %v791
        %v863 = vpop.f32.mrf.mxu0
        %v864 = vadd.f32 0.0, %v863
        %865 = vmatmul.f32.gmra.mxu0 %v792
        %v866 = vpop.f32.mrf.mxu0
        %v867 = vadd.f32 0.0, %v866
        %868 = vmatmul.f32.gmra.mxu0 %v793
        %v869 = vpop.f32.mrf.mxu0
        %v870 = vadd.f32 0.0, %v869
        %871 = vmatmul.f32.gmra.mxu0 %v794
        %v872 = vpop.f32.mrf.mxu0
        %v873 = vadd.f32 0.0, %v872
        %874 = vmatmul.f32.gmra.mxu0 %v795
        %v875 = vpop.f32.mrf.mxu0
        %v876 = vadd.f32 0.0, %v875
        %877 = vdwg.mxu0
        %878 = vst [vmem:[#allocation3 + $0x20] sm:$0xff] %v814
        %879 = vst [vmem:[#allocation3 + $0x28] sm:$0xff] %v855
        %880 = vst [vmem:[#allocation3 + $0x50] sm:$0xff] %v817
        %881 = vst [vmem:[#allocation3 + $0x58] sm:$0xff] %v858
        %882 = vst [vmem:[#allocation3 + $0x80] sm:$0xff] %v820
        %883 = vst [vmem:[#allocation3 + $0x88] sm:$0xff] %v861
        %884 = vst [vmem:[#allocation3 + $0xb0] sm:$0xff] %v823
        %885 = vst [vmem:[#allocation3 + $0xb8] sm:$0xff] %v864
        %886 = vst [vmem:[#allocation3 + $0xe0] sm:$0xff] %v826
        %887 = vst [vmem:[#allocation3 + $0xe8] sm:$0xff] %v867
        %888 = vst [vmem:[#allocation3 + $0x110] sm:$0xff] %v829
        %889 = vst [vmem:[#allocation3 + $0x118] sm:$0xff] %v870
        %890 = vst [vmem:[#allocation3 + $0x140] sm:$0xff] %v832
        %891 = vst [vmem:[#allocation3 + $0x148] sm:$0xff] %v873
        %892 = vst [vmem:[#allocation3 + $0x170] sm:$0xff] %v835
        %893 = vst [vmem:[#allocation3 + $0x178] sm:$0xff] %v876
        %v894 = vld [vmem:[#allocation3] sm:$0xff]
        %v895 = vld [vmem:[#allocation3 + $0x8] sm:$0xff]
        %v896 = vld [vmem:[#allocation3 + $0x10] sm:$0xff]
        %v897 = vld [vmem:[#allocation3 + $0x18] sm:$0xff]
        %v898 = vld [vmem:[#allocation3 + $0x20] sm:$0xff]
        %v899 = vld [vmem:[#allocation3 + $0x28] sm:$0xff]
        %v900 = vld [vmem:[#allocation3 + $0x30] sm:$0xff]
        %v901 = vld [vmem:[#allocation3 + $0x38] sm:$0xff]
        %v902 = vld [vmem:[#allocation3 + $0x40] sm:$0xff]
        %v903 = vld [vmem:[#allocation3 + $0x48] sm:$0xff]
        %v904 = vld [vmem:[#allocation3 + $0x50] sm:$0xff]
        %v905 = vld [vmem:[#allocation3 + $0x58] sm:$0xff]
        %v906 = vld [vmem:[#allocation3 + $0x60] sm:$0xff]
        %v907 = vld [vmem:[#allocation3 + $0x68] sm:$0xff]
        %v908 = vld [vmem:[#allocation3 + $0x70] sm:$0xff]
        %v909 = vld [vmem:[#allocation3 + $0x78] sm:$0xff]
        %v910 = vld [vmem:[#allocation3 + $0x80] sm:$0xff]
        %v911 = vld [vmem:[#allocation3 + $0x88] sm:$0xff]
        %v912 = vld [vmem:[#allocation3 + $0x90] sm:$0xff]
        %v913 = vld [vmem:[#allocation3 + $0x98] sm:$0xff]
        %v914 = vld [vmem:[#allocation3 + $0xa0] sm:$0xff]
        %v915 = vld [vmem:[#allocation3 + $0xa8] sm:$0xff]
        %v916 = vld [vmem:[#allocation3 + $0xb0] sm:$0xff]
        %v917 = vld [vmem:[#allocation3 + $0xb8] sm:$0xff]
        %v918 = vld [vmem:[#allocation3 + $0xc0] sm:$0xff]
        %v919 = vld [vmem:[#allocation3 + $0xc8] sm:$0xff]
        %v920 = vld [vmem:[#allocation3 + $0xd0] sm:$0xff]
        %v921 = vld [vmem:[#allocation3 + $0xd8] sm:$0xff]
        %v922 = vld [vmem:[#allocation3 + $0xe0] sm:$0xff]
        %v923 = vld [vmem:[#allocation3 + $0xe8] sm:$0xff]
        %v924 = vld [vmem:[#allocation3 + $0xf0] sm:$0xff]
        %v925 = vld [vmem:[#allocation3 + $0xf8] sm:$0xff]
        %v926 = vld [vmem:[#allocation3 + $0x100] sm:$0xff]
        %v927 = vld [vmem:[#allocation3 + $0x108] sm:$0xff]
        %v928 = vld [vmem:[#allocation3 + $0x110] sm:$0xff]
        %v929 = vld [vmem:[#allocation3 + $0x118] sm:$0xff]
        %v930 = vld [vmem:[#allocation3 + $0x120] sm:$0xff]
        %v931 = vld [vmem:[#allocation3 + $0x128] sm:$0xff]
        %v932 = vld [vmem:[#allocation3 + $0x130] sm:$0xff]
        %v933 = vld [vmem:[#allocation3 + $0x138] sm:$0xff]
        %v934 = vld [vmem:[#allocation3 + $0x140] sm:$0xff]
        %v935 = vld [vmem:[#allocation3 + $0x148] sm:$0xff]
        %v936 = vld [vmem:[#allocation3 + $0x150] sm:$0xff]
        %v937 = vld [vmem:[#allocation3 + $0x158] sm:$0xff]
        %v938 = vld [vmem:[#allocation3 + $0x160] sm:$0xff]
        %v939 = vld [vmem:[#allocation3 + $0x168] sm:$0xff]
        %v940 = vld [vmem:[#allocation3 + $0x170] sm:$0xff]
        %v941 = vld [vmem:[#allocation3 + $0x178] sm:$0xff]
        %vm942 = vcmask 523264
        %v944 = vsel %vm942, %v410, 0
        %v947 = vsel %vm942, %v411, 0
        %v950 = vsel %vm942, %v412, 0
        %v953 = vsel %vm942, %v413, 0
        %v956 = vsel %vm942, %v414, 0
        %v959 = vsel %vm942, %v415, 0
        %v962 = vsel %vm942, %v416, 0
        %v965 = vsel %vm942, %v417, 0
        %v968 = vsel %vm942, %v418, 0
        %v971 = vsel %vm942, %v419, 0
        %v974 = vsel %vm942, %v420, 0
        %v977 = vsel %vm942, %v421, 0
        %v980 = vsel %vm942, %v422, 0
        %v983 = vsel %vm942, %v423, 0
        %v986 = vsel %vm942, %v424, 0
        %v989 = vsel %vm942, %v425, 0
        %v992 = vsel %vm942, %v426, 0
        %v995 = vsel %vm942, %v427, 0
        %v998 = vsel %vm942, %v428, 0
        %v1001 = vsel %vm942, %v429, 0
        %v1004 = vsel %vm942, %v430, 0
        %v1007 = vsel %vm942, %v431, 0
        %v1010 = vsel %vm942, %v432, 0
        %v1013 = vsel %vm942, %v433, 0
        %v1016 = vsel %vm942, %v434, 0
        %v1019 = vsel %vm942, %v435, 0
        %v1022 = vsel %vm942, %v436, 0
        %v1025 = vsel %vm942, %v437, 0
        %v1028 = vsel %vm942, %v438, 0
        %1030 = vmatpush.msra.mxu0 0.0
        %1031 = vmatpush.msra.mxu0 0.0
        %1032 = vmatpush.msra.mxu0 0.0
        %1033 = vmatpush.msra.mxu0 0.0
        %1034 = vmatpush.msra.mxu0 0.0
        %1035 = vmatpush.msra.mxu0 0.0
        %1036 = vmatpush.msra.mxu0 0.0
        %1037 = vmatpush.msra.mxu0 0.0
        %1038 = vmatpush.msra.mxu0 %v936
        %1039 = vmatpush.msra.mxu0 %v930
        %1040 = vmatpush.msra.mxu0 %v924
        %1041 = vmatpush.msra.mxu0 %v918
        %1042 = vmatpush.msra.mxu0 %v912
        %1043 = vmatpush.msra.mxu0 %v906
        %1044 = vmatpush.msra.mxu0 %v900
        %1045 = vmatpush.msra.mxu0 %v894
        %1046 = vmatmul.f32.gmra.mxu0 %v944
        %v1047 = vpop.f32.mrf.mxu0
        %v1048 = vadd.f32 0.0, %v1047
        %1049 = vmatmul.f32.gmra.mxu0 %v947
        %v1050 = vpop.f32.mrf.mxu0
        %v1051 = vadd.f32 0.0, %v1050
        %1052 = vmatmul.f32.gmra.mxu0 %v950
        %v1053 = vpop.f32.mrf.mxu0
        %v1054 = vadd.f32 0.0, %v1053
        %1055 = vmatmul.f32.gmra.mxu0 %v953
        %v1056 = vpop.f32.mrf.mxu0
        %v1057 = vadd.f32 0.0, %v1056
        %1058 = vmatmul.f32.gmra.mxu0 %v956
        %v1059 = vpop.f32.mrf.mxu0
        %v1060 = vadd.f32 0.0, %v1059
        %1061 = vmatmul.f32.gmra.mxu0 %v959
        %v1062 = vpop.f32.mrf.mxu0
        %v1063 = vadd.f32 0.0, %v1062
        %1064 = vmatmul.f32.gmra.mxu0 %v962
        %v1065 = vpop.f32.mrf.mxu0
        %v1066 = vadd.f32 0.0, %v1065
        %1067 = vmatmul.f32.gmra.mxu0 %v965
        %v1068 = vpop.f32.mrf.mxu0
        %v1069 = vadd.f32 0.0, %v1068
        %1070 = vmatmul.f32.gmra.mxu0 %v968
        %v1071 = vpop.f32.mrf.mxu0
        %v1072 = vadd.f32 0.0, %v1071
        %1073 = vmatmul.f32.gmra.mxu0 %v971
        %v1074 = vpop.f32.mrf.mxu0
        %v1075 = vadd.f32 0.0, %v1074
        %1076 = vmatmul.f32.gmra.mxu0 %v974
        %v1077 = vpop.f32.mrf.mxu0
        %v1078 = vadd.f32 0.0, %v1077
        %1079 = vmatmul.f32.gmra.mxu0 %v977
        %v1080 = vpop.f32.mrf.mxu0
        %v1081 = vadd.f32 0.0, %v1080
        %1082 = vmatmul.f32.gmra.mxu0 %v980
        %v1083 = vpop.f32.mrf.mxu0
        %v1084 = vadd.f32 0.0, %v1083
        %1085 = vmatmul.f32.gmra.mxu0 %v983
        %v1086 = vpop.f32.mrf.mxu0
        %v1087 = vadd.f32 0.0, %v1086
        %1088 = vmatmul.f32.gmra.mxu0 %v986
        %v1089 = vpop.f32.mrf.mxu0
        %v1090 = vadd.f32 0.0, %v1089
        %1091 = vmatmul.f32.gmra.mxu0 %v989
        %v1092 = vpop.f32.mrf.mxu0
        %v1093 = vadd.f32 0.0, %v1092
        %1094 = vmatmul.f32.gmra.mxu0 %v992
        %v1095 = vpop.f32.mrf.mxu0
        %v1096 = vadd.f32 0.0, %v1095
        %1097 = vmatmul.f32.gmra.mxu0 %v995
        %v1098 = vpop.f32.mrf.mxu0
        %v1099 = vadd.f32 0.0, %v1098
        %1100 = vmatmul.f32.gmra.mxu0 %v998
        %v1101 = vpop.f32.mrf.mxu0
        %v1102 = vadd.f32 0.0, %v1101
        %1103 = vmatmul.f32.gmra.mxu0 %v1001
        %v1104 = vpop.f32.mrf.mxu0
        %v1105 = vadd.f32 0.0, %v1104
        %1106 = vmatmul.f32.gmra.mxu0 %v1004
        %v1107 = vpop.f32.mrf.mxu0
        %v1108 = vadd.f32 0.0, %v1107
        %1109 = vmatmul.f32.gmra.mxu0 %v1007
        %v1110 = vpop.f32.mrf.mxu0
        %v1111 = vadd.f32 0.0, %v1110
        %1112 = vmatmul.f32.gmra.mxu0 %v1010
        %v1113 = vpop.f32.mrf.mxu0
        %v1114 = vadd.f32 0.0, %v1113
        %1115 = vmatmul.f32.gmra.mxu0 %v1013
        %v1116 = vpop.f32.mrf.mxu0
        %v1117 = vadd.f32 0.0, %v1116
        %1118 = vmatmul.f32.gmra.mxu0 %v1016
        %v1119 = vpop.f32.mrf.mxu0
        %v1120 = vadd.f32 0.0, %v1119
        %1121 = vmatmul.f32.gmra.mxu0 %v1019
        %v1122 = vpop.f32.mrf.mxu0
        %v1123 = vadd.f32 0.0, %v1122
        %1124 = vmatmul.f32.gmra.mxu0 %v1022
        %v1125 = vpop.f32.mrf.mxu0
        %v1126 = vadd.f32 0.0, %v1125
        %1127 = vmatmul.f32.gmra.mxu0 %v1025
        %v1128 = vpop.f32.mrf.mxu0
        %v1129 = vadd.f32 0.0, %v1128
        %1130 = vmatmul.f32.gmra.mxu0 %v1028
        %v1131 = vpop.f32.mrf.mxu0
        %v1132 = vadd.f32 0.0, %v1131
        %1133 = vdwg.mxu0
        %1134 = vmatpush.msra.mxu0 0.0
        %1135 = vmatpush.msra.mxu0 0.0
        %1136 = vmatpush.msra.mxu0 0.0
        %1137 = vmatpush.msra.mxu0 0.0
        %1138 = vmatpush.msra.mxu0 0.0
        %1139 = vmatpush.msra.mxu0 0.0
        %1140 = vmatpush.msra.mxu0 0.0
        %1141 = vmatpush.msra.mxu0 0.0
        %1142 = vmatpush.msra.mxu0 %v937
        %1143 = vmatpush.msra.mxu0 %v931
        %1144 = vmatpush.msra.mxu0 %v925
        %1145 = vmatpush.msra.mxu0 %v919
        %1146 = vmatpush.msra.mxu0 %v913
        %1147 = vmatpush.msra.mxu0 %v907
        %1148 = vmatpush.msra.mxu0 %v901
        %1149 = vmatpush.msra.mxu0 %v895
        %1150 = vmatmul.f32.gmra.mxu0 %v944
        %v1151 = vpop.f32.mrf.mxu0
        %v1152 = vadd.f32 0.0, %v1151
        %1153 = vmatmul.f32.gmra.mxu0 %v947
        %v1154 = vpop.f32.mrf.mxu0
        %v1155 = vadd.f32 0.0, %v1154
        %1156 = vmatmul.f32.gmra.mxu0 %v950
        %v1157 = vpop.f32.mrf.mxu0
        %v1158 = vadd.f32 0.0, %v1157
        %1159 = vmatmul.f32.gmra.mxu0 %v953
        %v1160 = vpop.f32.mrf.mxu0
        %v1161 = vadd.f32 0.0, %v1160
        %1162 = vmatmul.f32.gmra.mxu0 %v956
        %v1163 = vpop.f32.mrf.mxu0
        %v1164 = vadd.f32 0.0, %v1163
        %1165 = vmatmul.f32.gmra.mxu0 %v959
        %v1166 = vpop.f32.mrf.mxu0
        %v1167 = vadd.f32 0.0, %v1166
        %1168 = vmatmul.f32.gmra.mxu0 %v962
        %v1169 = vpop.f32.mrf.mxu0
        %v1170 = vadd.f32 0.0, %v1169
        %1171 = vmatmul.f32.gmra.mxu0 %v965
        %v1172 = vpop.f32.mrf.mxu0
        %v1173 = vadd.f32 0.0, %v1172
        %1174 = vmatmul.f32.gmra.mxu0 %v968
        %v1175 = vpop.f32.mrf.mxu0
        %v1176 = vadd.f32 0.0, %v1175
        %1177 = vmatmul.f32.gmra.mxu0 %v971
        %v1178 = vpop.f32.mrf.mxu0
        %v1179 = vadd.f32 0.0, %v1178
        %1180 = vmatmul.f32.gmra.mxu0 %v974
        %v1181 = vpop.f32.mrf.mxu0
        %v1182 = vadd.f32 0.0, %v1181
        %1183 = vmatmul.f32.gmra.mxu0 %v977
        %v1184 = vpop.f32.mrf.mxu0
        %v1185 = vadd.f32 0.0, %v1184
        %1186 = vmatmul.f32.gmra.mxu0 %v980
        %v1187 = vpop.f32.mrf.mxu0
        %v1188 = vadd.f32 0.0, %v1187
        %1189 = vmatmul.f32.gmra.mxu0 %v983
        %v1190 = vpop.f32.mrf.mxu0
        %v1191 = vadd.f32 0.0, %v1190
        %1192 = vmatmul.f32.gmra.mxu0 %v986
        %v1193 = vpop.f32.mrf.mxu0
        %v1194 = vadd.f32 0.0, %v1193
        %1195 = vmatmul.f32.gmra.mxu0 %v989
        %v1196 = vpop.f32.mrf.mxu0
        %v1197 = vadd.f32 0.0, %v1196
        %1198 = vmatmul.f32.gmra.mxu0 %v992
        %v1199 = vpop.f32.mrf.mxu0
        %v1200 = vadd.f32 0.0, %v1199
        %1201 = vmatmul.f32.gmra.mxu0 %v995
        %v1202 = vpop.f32.mrf.mxu0
        %v1203 = vadd.f32 0.0, %v1202
        %1204 = vmatmul.f32.gmra.mxu0 %v998
        %v1205 = vpop.f32.mrf.mxu0
        %v1206 = vadd.f32 0.0, %v1205
        %1207 = vmatmul.f32.gmra.mxu0 %v1001
        %v1208 = vpop.f32.mrf.mxu0
        %v1209 = vadd.f32 0.0, %v1208
        %1210 = vmatmul.f32.gmra.mxu0 %v1004
        %v1211 = vpop.f32.mrf.mxu0
        %v1212 = vadd.f32 0.0, %v1211
        %1213 = vmatmul.f32.gmra.mxu0 %v1007
        %v1214 = vpop.f32.mrf.mxu0
        %v1215 = vadd.f32 0.0, %v1214
        %1216 = vmatmul.f32.gmra.mxu0 %v1010
        %v1217 = vpop.f32.mrf.mxu0
        %v1218 = vadd.f32 0.0, %v1217
        %1219 = vmatmul.f32.gmra.mxu0 %v1013
        %v1220 = vpop.f32.mrf.mxu0
        %v1221 = vadd.f32 0.0, %v1220
        %1222 = vmatmul.f32.gmra.mxu0 %v1016
        %v1223 = vpop.f32.mrf.mxu0
        %v1224 = vadd.f32 0.0, %v1223
        %1225 = vmatmul.f32.gmra.mxu0 %v1019
        %v1226 = vpop.f32.mrf.mxu0
        %v1227 = vadd.f32 0.0, %v1226
        %1228 = vmatmul.f32.gmra.mxu0 %v1022
        %v1229 = vpop.f32.mrf.mxu0
        %v1230 = vadd.f32 0.0, %v1229
        %1231 = vmatmul.f32.gmra.mxu0 %v1025
        %v1232 = vpop.f32.mrf.mxu0
        %v1233 = vadd.f32 0.0, %v1232
        %1234 = vmatmul.f32.gmra.mxu0 %v1028
        %v1235 = vpop.f32.mrf.mxu0
        %v1236 = vadd.f32 0.0, %v1235
        %1237 = vdwg.mxu0
        %1238 = vmatpush.msra.mxu0 0.0
        %1239 = vmatpush.msra.mxu0 0.0
        %1240 = vmatpush.msra.mxu0 0.0
        %1241 = vmatpush.msra.mxu0 0.0
        %1242 = vmatpush.msra.mxu0 0.0
        %1243 = vmatpush.msra.mxu0 0.0
        %1244 = vmatpush.msra.mxu0 0.0
        %1245 = vmatpush.msra.mxu0 0.0
        %1246 = vmatpush.msra.mxu0 %v938
        %1247 = vmatpush.msra.mxu0 %v932
        %1248 = vmatpush.msra.mxu0 %v926
        %1249 = vmatpush.msra.mxu0 %v920
        %1250 = vmatpush.msra.mxu0 %v914
        %1251 = vmatpush.msra.mxu0 %v908
        %1252 = vmatpush.msra.mxu0 %v902
        %1253 = vmatpush.msra.mxu0 %v896
        %1254 = vmatmul.f32.gmra.mxu0 %v944
        %v1255 = vpop.f32.mrf.mxu0
        %v1256 = vadd.f32 0.0, %v1255
        %1257 = vmatmul.f32.gmra.mxu0 %v947
        %v1258 = vpop.f32.mrf.mxu0
        %v1259 = vadd.f32 0.0, %v1258
        %1260 = vmatmul.f32.gmra.mxu0 %v950
        %v1261 = vpop.f32.mrf.mxu0
        %v1262 = vadd.f32 0.0, %v1261
        %1263 = vmatmul.f32.gmra.mxu0 %v953
        %v1264 = vpop.f32.mrf.mxu0
        %v1265 = vadd.f32 0.0, %v1264
        %1266 = vmatmul.f32.gmra.mxu0 %v956
        %v1267 = vpop.f32.mrf.mxu0
        %v1268 = vadd.f32 0.0, %v1267
        %1269 = vmatmul.f32.gmra.mxu0 %v959
        %v1270 = vpop.f32.mrf.mxu0
        %v1271 = vadd.f32 0.0, %v1270
        %1272 = vmatmul.f32.gmra.mxu0 %v962
        %v1273 = vpop.f32.mrf.mxu0
        %v1274 = vadd.f32 0.0, %v1273
        %1275 = vmatmul.f32.gmra.mxu0 %v965
        %v1276 = vpop.f32.mrf.mxu0
        %v1277 = vadd.f32 0.0, %v1276
        %1278 = vmatmul.f32.gmra.mxu0 %v968
        %v1279 = vpop.f32.mrf.mxu0
        %v1280 = vadd.f32 0.0, %v1279
        %1281 = vmatmul.f32.gmra.mxu0 %v971
        %v1282 = vpop.f32.mrf.mxu0
        %v1283 = vadd.f32 0.0, %v1282
        %1284 = vmatmul.f32.gmra.mxu0 %v974
        %v1285 = vpop.f32.mrf.mxu0
        %v1286 = vadd.f32 0.0, %v1285
        %1287 = vmatmul.f32.gmra.mxu0 %v977
        %v1288 = vpop.f32.mrf.mxu0
        %v1289 = vadd.f32 0.0, %v1288
        %1290 = vmatmul.f32.gmra.mxu0 %v980
        %v1291 = vpop.f32.mrf.mxu0
        %v1292 = vadd.f32 0.0, %v1291
        %1293 = vmatmul.f32.gmra.mxu0 %v983
        %v1294 = vpop.f32.mrf.mxu0
        %v1295 = vadd.f32 0.0, %v1294
        %1296 = vmatmul.f32.gmra.mxu0 %v986
        %v1297 = vpop.f32.mrf.mxu0
        %v1298 = vadd.f32 0.0, %v1297
        %1299 = vmatmul.f32.gmra.mxu0 %v989
        %v1300 = vpop.f32.mrf.mxu0
        %v1301 = vadd.f32 0.0, %v1300
        %1302 = vmatmul.f32.gmra.mxu0 %v992
        %v1303 = vpop.f32.mrf.mxu0
        %v1304 = vadd.f32 0.0, %v1303
        %1305 = vmatmul.f32.gmra.mxu0 %v995
        %v1306 = vpop.f32.mrf.mxu0
        %v1307 = vadd.f32 0.0, %v1306
        %1308 = vmatmul.f32.gmra.mxu0 %v998
        %v1309 = vpop.f32.mrf.mxu0
        %v1310 = vadd.f32 0.0, %v1309
        %1311 = vmatmul.f32.gmra.mxu0 %v1001
        %v1312 = vpop.f32.mrf.mxu0
        %v1313 = vadd.f32 0.0, %v1312
        %1314 = vmatmul.f32.gmra.mxu0 %v1004
        %v1315 = vpop.f32.mrf.mxu0
        %v1316 = vadd.f32 0.0, %v1315
        %1317 = vmatmul.f32.gmra.mxu0 %v1007
        %v1318 = vpop.f32.mrf.mxu0
        %v1319 = vadd.f32 0.0, %v1318
        %1320 = vmatmul.f32.gmra.mxu0 %v1010
        %v1321 = vpop.f32.mrf.mxu0
        %v1322 = vadd.f32 0.0, %v1321
        %1323 = vmatmul.f32.gmra.mxu0 %v1013
        %v1324 = vpop.f32.mrf.mxu0
        %v1325 = vadd.f32 0.0, %v1324
        %1326 = vmatmul.f32.gmra.mxu0 %v1016
        %v1327 = vpop.f32.mrf.mxu0
        %v1328 = vadd.f32 0.0, %v1327
        %1329 = vmatmul.f32.gmra.mxu0 %v1019
        %v1330 = vpop.f32.mrf.mxu0
        %v1331 = vadd.f32 0.0, %v1330
        %1332 = vmatmul.f32.gmra.mxu0 %v1022
        %v1333 = vpop.f32.mrf.mxu0
        %v1334 = vadd.f32 0.0, %v1333
        %1335 = vmatmul.f32.gmra.mxu0 %v1025
        %v1336 = vpop.f32.mrf.mxu0
        %v1337 = vadd.f32 0.0, %v1336
        %1338 = vmatmul.f32.gmra.mxu0 %v1028
        %v1339 = vpop.f32.mrf.mxu0
        %v1340 = vadd.f32 0.0, %v1339
        %1341 = vdwg.mxu0
        %1342 = vmatpush.msra.mxu0 0.0
        %1343 = vmatpush.msra.mxu0 0.0
        %1344 = vmatpush.msra.mxu0 0.0
        %1345 = vmatpush.msra.mxu0 0.0
        %1346 = vmatpush.msra.mxu0 0.0
        %1347 = vmatpush.msra.mxu0 0.0
        %1348 = vmatpush.msra.mxu0 0.0
        %1349 = vmatpush.msra.mxu0 0.0
        %1350 = vmatpush.msra.mxu0 %v939
        %1351 = vmatpush.msra.mxu0 %v933
        %1352 = vmatpush.msra.mxu0 %v927
        %1353 = vmatpush.msra.mxu0 %v921
        %1354 = vmatpush.msra.mxu0 %v915
        %1355 = vmatpush.msra.mxu0 %v909
        %1356 = vmatpush.msra.mxu0 %v903
        %1357 = vmatpush.msra.mxu0 %v897
        %1358 = vmatmul.f32.gmra.mxu0 %v944
        %v1359 = vpop.f32.mrf.mxu0
        %v1360 = vadd.f32 0.0, %v1359
        %1361 = vmatmul.f32.gmra.mxu0 %v947
        %v1362 = vpop.f32.mrf.mxu0
        %v1363 = vadd.f32 0.0, %v1362
        %1364 = vmatmul.f32.gmra.mxu0 %v950
        %v1365 = vpop.f32.mrf.mxu0
        %v1366 = vadd.f32 0.0, %v1365
        %1367 = vmatmul.f32.gmra.mxu0 %v953
        %v1368 = vpop.f32.mrf.mxu0
        %v1369 = vadd.f32 0.0, %v1368
        %1370 = vmatmul.f32.gmra.mxu0 %v956
        %v1371 = vpop.f32.mrf.mxu0
        %v1372 = vadd.f32 0.0, %v1371
        %1373 = vmatmul.f32.gmra.mxu0 %v959
        %v1374 = vpop.f32.mrf.mxu0
        %v1375 = vadd.f32 0.0, %v1374
        %1376 = vmatmul.f32.gmra.mxu0 %v962
        %v1377 = vpop.f32.mrf.mxu0
        %v1378 = vadd.f32 0.0, %v1377
        %1379 = vmatmul.f32.gmra.mxu0 %v965
        %v1380 = vpop.f32.mrf.mxu0
        %v1381 = vadd.f32 0.0, %v1380
        %1382 = vmatmul.f32.gmra.mxu0 %v968
        %v1383 = vpop.f32.mrf.mxu0
        %v1384 = vadd.f32 0.0, %v1383
        %1385 = vmatmul.f32.gmra.mxu0 %v971
        %v1386 = vpop.f32.mrf.mxu0
        %v1387 = vadd.f32 0.0, %v1386
        %1388 = vmatmul.f32.gmra.mxu0 %v974
        %v1389 = vpop.f32.mrf.mxu0
        %v1390 = vadd.f32 0.0, %v1389
        %1391 = vmatmul.f32.gmra.mxu0 %v977
        %v1392 = vpop.f32.mrf.mxu0
        %v1393 = vadd.f32 0.0, %v1392
        %1394 = vmatmul.f32.gmra.mxu0 %v980
        %v1395 = vpop.f32.mrf.mxu0
        %v1396 = vadd.f32 0.0, %v1395
        %1397 = vmatmul.f32.gmra.mxu0 %v983
        %v1398 = vpop.f32.mrf.mxu0
        %v1399 = vadd.f32 0.0, %v1398
        %1400 = vmatmul.f32.gmra.mxu0 %v986
        %v1401 = vpop.f32.mrf.mxu0
        %v1402 = vadd.f32 0.0, %v1401
        %1403 = vmatmul.f32.gmra.mxu0 %v989
        %v1404 = vpop.f32.mrf.mxu0
        %v1405 = vadd.f32 0.0, %v1404
        %1406 = vmatmul.f32.gmra.mxu0 %v992
        %v1407 = vpop.f32.mrf.mxu0
        %v1408 = vadd.f32 0.0, %v1407
        %1409 = vmatmul.f32.gmra.mxu0 %v995
        %v1410 = vpop.f32.mrf.mxu0
        %v1411 = vadd.f32 0.0, %v1410
        %1412 = vmatmul.f32.gmra.mxu0 %v998
        %v1413 = vpop.f32.mrf.mxu0
        %v1414 = vadd.f32 0.0, %v1413
        %1415 = vmatmul.f32.gmra.mxu0 %v1001
        %v1416 = vpop.f32.mrf.mxu0
        %v1417 = vadd.f32 0.0, %v1416
        %1418 = vmatmul.f32.gmra.mxu0 %v1004
        %v1419 = vpop.f32.mrf.mxu0
        %v1420 = vadd.f32 0.0, %v1419
        %1421 = vmatmul.f32.gmra.mxu0 %v1007
        %v1422 = vpop.f32.mrf.mxu0
        %v1423 = vadd.f32 0.0, %v1422
        %1424 = vmatmul.f32.gmra.mxu0 %v1010
        %v1425 = vpop.f32.mrf.mxu0
        %v1426 = vadd.f32 0.0, %v1425
        %1427 = vmatmul.f32.gmra.mxu0 %v1013
        %v1428 = vpop.f32.mrf.mxu0
        %v1429 = vadd.f32 0.0, %v1428
        %1430 = vmatmul.f32.gmra.mxu0 %v1016
        %v1431 = vpop.f32.mrf.mxu0
        %v1432 = vadd.f32 0.0, %v1431
        %1433 = vmatmul.f32.gmra.mxu0 %v1019
        %v1434 = vpop.f32.mrf.mxu0
        %v1435 = vadd.f32 0.0, %v1434
        %1436 = vmatmul.f32.gmra.mxu0 %v1022
        %v1437 = vpop.f32.mrf.mxu0
        %v1438 = vadd.f32 0.0, %v1437
        %1439 = vmatmul.f32.gmra.mxu0 %v1025
        %v1440 = vpop.f32.mrf.mxu0
        %v1441 = vadd.f32 0.0, %v1440
        %1442 = vmatmul.f32.gmra.mxu0 %v1028
        %v1443 = vpop.f32.mrf.mxu0
        %v1444 = vadd.f32 0.0, %v1443
        %1445 = vdwg.mxu0
        %1446 = vmatpush.msra.mxu0 0.0
        %1447 = vmatpush.msra.mxu0 0.0
        %1448 = vmatpush.msra.mxu0 0.0
        %1449 = vmatpush.msra.mxu0 0.0
        %1450 = vmatpush.msra.mxu0 0.0
        %1451 = vmatpush.msra.mxu0 0.0
        %1452 = vmatpush.msra.mxu0 0.0
        %1453 = vmatpush.msra.mxu0 0.0
        %1454 = vmatpush.msra.mxu0 %v940
        %1455 = vmatpush.msra.mxu0 %v934
        %1456 = vmatpush.msra.mxu0 %v928
        %1457 = vmatpush.msra.mxu0 %v922
        %1458 = vmatpush.msra.mxu0 %v916
        %1459 = vmatpush.msra.mxu0 %v910
        %1460 = vmatpush.msra.mxu0 %v904
        %1461 = vmatpush.msra.mxu0 %v898
        %1462 = vmatmul.f32.gmra.mxu0 %v944
        %v1463 = vpop.f32.mrf.mxu0
        %v1464 = vadd.f32 0.0, %v1463
        %1465 = vmatmul.f32.gmra.mxu0 %v947
        %v1466 = vpop.f32.mrf.mxu0
        %v1467 = vadd.f32 0.0, %v1466
        %1468 = vmatmul.f32.gmra.mxu0 %v950
        %v1469 = vpop.f32.mrf.mxu0
        %v1470 = vadd.f32 0.0, %v1469
        %1471 = vmatmul.f32.gmra.mxu0 %v953
        %v1472 = vpop.f32.mrf.mxu0
        %v1473 = vadd.f32 0.0, %v1472
        %1474 = vmatmul.f32.gmra.mxu0 %v956
        %v1475 = vpop.f32.mrf.mxu0
        %v1476 = vadd.f32 0.0, %v1475
        %1477 = vmatmul.f32.gmra.mxu0 %v959
        %v1478 = vpop.f32.mrf.mxu0
        %v1479 = vadd.f32 0.0, %v1478
        %1480 = vmatmul.f32.gmra.mxu0 %v962
        %v1481 = vpop.f32.mrf.mxu0
        %v1482 = vadd.f32 0.0, %v1481
        %1483 = vmatmul.f32.gmra.mxu0 %v965
        %v1484 = vpop.f32.mrf.mxu0
        %v1485 = vadd.f32 0.0, %v1484
        %1486 = vmatmul.f32.gmra.mxu0 %v968
        %v1487 = vpop.f32.mrf.mxu0
        %v1488 = vadd.f32 0.0, %v1487
        %1489 = vmatmul.f32.gmra.mxu0 %v971
        %v1490 = vpop.f32.mrf.mxu0
        %v1491 = vadd.f32 0.0, %v1490
        %1492 = vmatmul.f32.gmra.mxu0 %v974
        %v1493 = vpop.f32.mrf.mxu0
        %v1494 = vadd.f32 0.0, %v1493
        %1495 = vmatmul.f32.gmra.mxu0 %v977
        %v1496 = vpop.f32.mrf.mxu0
        %v1497 = vadd.f32 0.0, %v1496
        %1498 = vmatmul.f32.gmra.mxu0 %v980
        %v1499 = vpop.f32.mrf.mxu0
        %v1500 = vadd.f32 0.0, %v1499
        %1501 = vmatmul.f32.gmra.mxu0 %v983
        %v1502 = vpop.f32.mrf.mxu0
        %v1503 = vadd.f32 0.0, %v1502
        %1504 = vmatmul.f32.gmra.mxu0 %v986
        %v1505 = vpop.f32.mrf.mxu0
        %v1506 = vadd.f32 0.0, %v1505
        %1507 = vmatmul.f32.gmra.mxu0 %v989
        %v1508 = vpop.f32.mrf.mxu0
        %v1509 = vadd.f32 0.0, %v1508
        %1510 = vmatmul.f32.gmra.mxu0 %v992
        %v1511 = vpop.f32.mrf.mxu0
        %v1512 = vadd.f32 0.0, %v1511
        %1513 = vmatmul.f32.gmra.mxu0 %v995
        %v1514 = vpop.f32.mrf.mxu0
        %v1515 = vadd.f32 0.0, %v1514
        %1516 = vmatmul.f32.gmra.mxu0 %v998
        %v1517 = vpop.f32.mrf.mxu0
        %v1518 = vadd.f32 0.0, %v1517
        %1519 = vmatmul.f32.gmra.mxu0 %v1001
        %v1520 = vpop.f32.mrf.mxu0
        %v1521 = vadd.f32 0.0, %v1520
        %1522 = vmatmul.f32.gmra.mxu0 %v1004
        %v1523 = vpop.f32.mrf.mxu0
        %v1524 = vadd.f32 0.0, %v1523
        %1525 = vmatmul.f32.gmra.mxu0 %v1007
        %v1526 = vpop.f32.mrf.mxu0
        %v1527 = vadd.f32 0.0, %v1526
        %1528 = vmatmul.f32.gmra.mxu0 %v1010
        %v1529 = vpop.f32.mrf.mxu0
        %v1530 = vadd.f32 0.0, %v1529
        %1531 = vmatmul.f32.gmra.mxu0 %v1013
        %v1532 = vpop.f32.mrf.mxu0
        %v1533 = vadd.f32 0.0, %v1532
        %1534 = vmatmul.f32.gmra.mxu0 %v1016
        %v1535 = vpop.f32.mrf.mxu0
        %v1536 = vadd.f32 0.0, %v1535
        %1537 = vmatmul.f32.gmra.mxu0 %v1019
        %v1538 = vpop.f32.mrf.mxu0
        %v1539 = vadd.f32 0.0, %v1538
        %1540 = vmatmul.f32.gmra.mxu0 %v1022
        %v1541 = vpop.f32.mrf.mxu0
        %v1542 = vadd.f32 0.0, %v1541
        %1543 = vmatmul.f32.gmra.mxu0 %v1025
        %v1544 = vpop.f32.mrf.mxu0
        %v1545 = vadd.f32 0.0, %v1544
        %1546 = vmatmul.f32.gmra.mxu0 %v1028
        %v1547 = vpop.f32.mrf.mxu0
        %v1548 = vadd.f32 0.0, %v1547
        %1549 = vdwg.mxu0
        %1550 = vmatpush.msra.mxu0 0.0
        %1551 = vmatpush.msra.mxu0 0.0
        %1552 = vmatpush.msra.mxu0 0.0
        %1553 = vmatpush.msra.mxu0 0.0
        %1554 = vmatpush.msra.mxu0 0.0
        %1555 = vmatpush.msra.mxu0 0.0
        %1556 = vmatpush.msra.mxu0 0.0
        %1557 = vmatpush.msra.mxu0 0.0
        %1558 = vmatpush.msra.mxu0 %v941
        %1559 = vmatpush.msra.mxu0 %v935
        %1560 = vmatpush.msra.mxu0 %v929
        %1561 = vmatpush.msra.mxu0 %v923
        %1562 = vmatpush.msra.mxu0 %v917
        %1563 = vmatpush.msra.mxu0 %v911
        %1564 = vmatpush.msra.mxu0 %v905
        %1565 = vmatpush.msra.mxu0 %v899
        %1566 = vmatmul.f32.gmra.mxu0 %v944
        %v1567 = vpop.f32.mrf.mxu0
        %v1568 = vadd.f32 0.0, %v1567
        %1569 = vmatmul.f32.gmra.mxu0 %v947
        %v1570 = vpop.f32.mrf.mxu0
        %v1571 = vadd.f32 0.0, %v1570
        %1572 = vmatmul.f32.gmra.mxu0 %v950
        %v1573 = vpop.f32.mrf.mxu0
        %v1574 = vadd.f32 0.0, %v1573
        %1575 = vmatmul.f32.gmra.mxu0 %v953
        %v1576 = vpop.f32.mrf.mxu0
        %v1577 = vadd.f32 0.0, %v1576
        %1578 = vmatmul.f32.gmra.mxu0 %v956
        %v1579 = vpop.f32.mrf.mxu0
        %v1580 = vadd.f32 0.0, %v1579
        %1581 = vmatmul.f32.gmra.mxu0 %v959
        %v1582 = vpop.f32.mrf.mxu0
        %v1583 = vadd.f32 0.0, %v1582
        %1584 = vmatmul.f32.gmra.mxu0 %v962
        %v1585 = vpop.f32.mrf.mxu0
        %v1586 = vadd.f32 0.0, %v1585
        %1587 = vmatmul.f32.gmra.mxu0 %v965
        %v1588 = vpop.f32.mrf.mxu0
        %v1589 = vadd.f32 0.0, %v1588
        %1590 = vmatmul.f32.gmra.mxu0 %v968
        %v1591 = vpop.f32.mrf.mxu0
        %v1592 = vadd.f32 0.0, %v1591
        %1593 = vmatmul.f32.gmra.mxu0 %v971
        %v1594 = vpop.f32.mrf.mxu0
        %v1595 = vadd.f32 0.0, %v1594
        %1596 = vmatmul.f32.gmra.mxu0 %v974
        %v1597 = vpop.f32.mrf.mxu0
        %v1598 = vadd.f32 0.0, %v1597
        %1599 = vmatmul.f32.gmra.mxu0 %v977
        %v1600 = vpop.f32.mrf.mxu0
        %v1601 = vadd.f32 0.0, %v1600
        %1602 = vmatmul.f32.gmra.mxu0 %v980
        %v1603 = vpop.f32.mrf.mxu0
        %v1604 = vadd.f32 0.0, %v1603
        %1605 = vmatmul.f32.gmra.mxu0 %v983
        %v1606 = vpop.f32.mrf.mxu0
        %v1607 = vadd.f32 0.0, %v1606
        %1608 = vmatmul.f32.gmra.mxu0 %v986
        %v1609 = vpop.f32.mrf.mxu0
        %v1610 = vadd.f32 0.0, %v1609
        %1611 = vmatmul.f32.gmra.mxu0 %v989
        %v1612 = vpop.f32.mrf.mxu0
        %v1613 = vadd.f32 0.0, %v1612
        %1614 = vmatmul.f32.gmra.mxu0 %v992
        %v1615 = vpop.f32.mrf.mxu0
        %v1616 = vadd.f32 0.0, %v1615
        %1617 = vmatmul.f32.gmra.mxu0 %v995
        %v1618 = vpop.f32.mrf.mxu0
        %v1619 = vadd.f32 0.0, %v1618
        %1620 = vmatmul.f32.gmra.mxu0 %v998
        %v1621 = vpop.f32.mrf.mxu0
        %v1622 = vadd.f32 0.0, %v1621
        %1623 = vmatmul.f32.gmra.mxu0 %v1001
        %v1624 = vpop.f32.mrf.mxu0
        %v1625 = vadd.f32 0.0, %v1624
        %1626 = vmatmul.f32.gmra.mxu0 %v1004
        %v1627 = vpop.f32.mrf.mxu0
        %v1628 = vadd.f32 0.0, %v1627
        %1629 = vmatmul.f32.gmra.mxu0 %v1007
        %v1630 = vpop.f32.mrf.mxu0
        %v1631 = vadd.f32 0.0, %v1630
        %1632 = vmatmul.f32.gmra.mxu0 %v1010
        %v1633 = vpop.f32.mrf.mxu0
        %v1634 = vadd.f32 0.0, %v1633
        %1635 = vmatmul.f32.gmra.mxu0 %v1013
        %v1636 = vpop.f32.mrf.mxu0
        %v1637 = vadd.f32 0.0, %v1636
        %1638 = vmatmul.f32.gmra.mxu0 %v1016
        %v1639 = vpop.f32.mrf.mxu0
        %v1640 = vadd.f32 0.0, %v1639
        %1641 = vmatmul.f32.gmra.mxu0 %v1019
        %v1642 = vpop.f32.mrf.mxu0
        %v1643 = vadd.f32 0.0, %v1642
        %1644 = vmatmul.f32.gmra.mxu0 %v1022
        %v1645 = vpop.f32.mrf.mxu0
        %v1646 = vadd.f32 0.0, %v1645
        %1647 = vmatmul.f32.gmra.mxu0 %v1025
        %v1648 = vpop.f32.mrf.mxu0
        %v1649 = vadd.f32 0.0, %v1648
        %1650 = vmatmul.f32.gmra.mxu0 %v1028
        %v1651 = vpop.f32.mrf.mxu0
        %v1652 = vadd.f32 0.0, %v1651
        %1653 = vdwg.mxu0
        %1654 = vst [vmem:[%s191] sm:$0xff] %v1048
        %1655 = vst [vmem:[%s191 + $0x8] sm:$0xff] %v1152
        %1656 = vst [vmem:[%s191 + $0x10] sm:$0xff] %v1051
        %1657 = vst [vmem:[%s191 + $0x18] sm:$0xff] %v1155
        %1658 = vst [vmem:[%s191 + $0x20] sm:$0xff] %v1054
        %1659 = vst [vmem:[%s191 + $0x28] sm:$0xff] %v1158
        %1660 = vst [vmem:[%s191 + $0x30] sm:$0xff] %v1057
        %1661 = vst [vmem:[%s191 + $0x38] sm:$0xff] %v1161
        %1662 = vst [vmem:[%s191 + $0x40] sm:$0xff] %v1060
        %1663 = vst [vmem:[%s191 + $0x48] sm:$0xff] %v1164
        %1664 = vst [vmem:[%s191 + $0x50] sm:$0xff] %v1063
        %1665 = vst [vmem:[%s191 + $0x58] sm:$0xff] %v1167
        %1666 = vst [vmem:[%s191 + $0x60] sm:$0xff] %v1066
        %1667 = vst [vmem:[%s191 + $0x68] sm:$0xff] %v1170
        %1668 = vst [vmem:[%s191 + $0x70] sm:$0xff] %v1069
        %1669 = vst [vmem:[%s191 + $0x78] sm:$0xff] %v1173
        %1670 = vst [vmem:[%s191 + $0x80] sm:$0xff] %v1072
        %1671 = vst [vmem:[%s191 + $0x88] sm:$0xff] %v1176
        %1672 = vst [vmem:[%s191 + $0x90] sm:$0xff] %v1075
        %1673 = vst [vmem:[%s191 + $0x98] sm:$0xff] %v1179
        %1674 = vst [vmem:[%s191 + $0xa0] sm:$0xff] %v1078
        %1675 = vst [vmem:[%s191 + $0xa8] sm:$0xff] %v1182
        %1676 = vst [vmem:[%s191 + $0xb0] sm:$0xff] %v1081
        %1677 = vst [vmem:[%s191 + $0xb8] sm:$0xff] %v1185
        %1678 = vst [vmem:[%s191 + $0xc0] sm:$0xff] %v1084
        %1679 = vst [vmem:[%s191 + $0xc8] sm:$0xff] %v1188
        %1680 = vst [vmem:[%s191 + $0xd0] sm:$0xff] %v1087
        %1681 = vst [vmem:[%s191 + $0xd8] sm:$0xff] %v1191
        %1682 = vst [vmem:[%s191 + $0xe0] sm:$0xff] %v1090
        %1683 = vst [vmem:[%s191 + $0xe8] sm:$0xff] %v1194
        %1684 = vst [vmem:[%s191 + $0xf0] sm:$0xff] %v1093
        %1685 = vst [vmem:[%s191 + $0xf8] sm:$0xff] %v1197
        %1686 = vst [vmem:[%s191 + $0x100] sm:$0xff] %v1096
        %1687 = vst [vmem:[%s191 + $0x108] sm:$0xff] %v1200
        %1688 = vst [vmem:[%s191 + $0x110] sm:$0xff] %v1099
        %1689 = vst [vmem:[%s191 + $0x118] sm:$0xff] %v1203
        %1690 = vst [vmem:[%s191 + $0x120] sm:$0xff] %v1102
        %1691 = vst [vmem:[%s191 + $0x128] sm:$0xff] %v1206
        %1692 = vst [vmem:[%s191 + $0x130] sm:$0xff] %v1105
        %1693 = vst [vmem:[%s191 + $0x138] sm:$0xff] %v1209
        %1694 = vst [vmem:[%s191 + $0x140] sm:$0xff] %v1108
        %1695 = vst [vmem:[%s191 + $0x148] sm:$0xff] %v1212
        %1696 = vst [vmem:[%s191 + $0x150] sm:$0xff] %v1111
        %1697 = vst [vmem:[%s191 + $0x158] sm:$0xff] %v1215
        %1698 = vst [vmem:[%s191 + $0x160] sm:$0xff] %v1114
        %1699 = vst [vmem:[%s191 + $0x168] sm:$0xff] %v1218
        %1700 = vst [vmem:[%s191 + $0x170] sm:$0xff] %v1117
        %1701 = vst [vmem:[%s191 + $0x178] sm:$0xff] %v1221
        %1702 = vst [vmem:[%s191 + $0x180] sm:$0xff] %v1120
        %1703 = vst [vmem:[%s191 + $0x188] sm:$0xff] %v1224
        %1704 = vst [vmem:[%s191 + $0x190] sm:$0xff] %v1123
        %1705 = vst [vmem:[%s191 + $0x198] sm:$0xff] %v1227
        %1706 = vst [vmem:[%s191 + $0x1a0] sm:$0xff] %v1126
        %1707 = vst [vmem:[%s191 + $0x1a8] sm:$0xff] %v1230
        %1708 = vst [vmem:[%s191 + $0x1b0] sm:$0xff] %v1129
        %1709 = vst [vmem:[%s191 + $0x1b8] sm:$0xff] %v1233
        %1710 = vst [vmem:[%s191 + $0x1c0] sm:$0xff] %v1132
        %1711 = vst [vmem:[%s191 + $0x1c8] sm:$0xff] %v1236
        %s1712 = scalar_lea.vmem %s191, 464 [#allocation11]
        %1713 = vst [vmem:[%s1712] sm:$0xff] %v1256
        %1714 = vst [vmem:[%s1712 + $0x8] sm:$0xff] %v1360
        %1715 = vst [vmem:[%s1712 + $0x10] sm:$0xff] %v1259
        %1716 = vst [vmem:[%s1712 + $0x18] sm:$0xff] %v1363
        %1717 = vst [vmem:[%s1712 + $0x20] sm:$0xff] %v1262
        %1718 = vst [vmem:[%s1712 + $0x28] sm:$0xff] %v1366
        %1719 = vst [vmem:[%s1712 + $0x30] sm:$0xff] %v1265
        %1720 = vst [vmem:[%s1712 + $0x38] sm:$0xff] %v1369
        %1721 = vst [vmem:[%s1712 + $0x40] sm:$0xff] %v1268
        %1722 = vst [vmem:[%s1712 + $0x48] sm:$0xff] %v1372
        %1723 = vst [vmem:[%s1712 + $0x50] sm:$0xff] %v1271
        %1724 = vst [vmem:[%s1712 + $0x58] sm:$0xff] %v1375
        %1725 = vst [vmem:[%s1712 + $0x60] sm:$0xff] %v1274
        %1726 = vst [vmem:[%s1712 + $0x68] sm:$0xff] %v1378
        %1727 = vst [vmem:[%s1712 + $0x70] sm:$0xff] %v1277
        %1728 = vst [vmem:[%s1712 + $0x78] sm:$0xff] %v1381
        %1729 = vst [vmem:[%s1712 + $0x80] sm:$0xff] %v1280
        %1730 = vst [vmem:[%s1712 + $0x88] sm:$0xff] %v1384
        %1731 = vst [vmem:[%s1712 + $0x90] sm:$0xff] %v1283
        %1732 = vst [vmem:[%s1712 + $0x98] sm:$0xff] %v1387
        %1733 = vst [vmem:[%s1712 + $0xa0] sm:$0xff] %v1286
        %1734 = vst [vmem:[%s1712 + $0xa8] sm:$0xff] %v1390
        %1735 = vst [vmem:[%s1712 + $0xb0] sm:$0xff] %v1289
        %1736 = vst [vmem:[%s1712 + $0xb8] sm:$0xff] %v1393
        %1737 = vst [vmem:[%s1712 + $0xc0] sm:$0xff] %v1292
        %1738 = vst [vmem:[%s1712 + $0xc8] sm:$0xff] %v1396
        %1739 = vst [vmem:[%s1712 + $0xd0] sm:$0xff] %v1295
        %1740 = vst [vmem:[%s1712 + $0xd8] sm:$0xff] %v1399
        %1741 = vst [vmem:[%s1712 + $0xe0] sm:$0xff] %v1298
        %1742 = vst [vmem:[%s1712 + $0xe8] sm:$0xff] %v1402
        %1743 = vst [vmem:[%s1712 + $0xf0] sm:$0xff] %v1301
        %1744 = vst [vmem:[%s1712 + $0xf8] sm:$0xff] %v1405
        %1745 = vst [vmem:[%s1712 + $0x100] sm:$0xff] %v1304
        %1746 = vst [vmem:[%s1712 + $0x108] sm:$0xff] %v1408
        %1747 = vst [vmem:[%s1712 + $0x110] sm:$0xff] %v1307
        %1748 = vst [vmem:[%s1712 + $0x118] sm:$0xff] %v1411
        %1749 = vst [vmem:[%s1712 + $0x120] sm:$0xff] %v1310
        %1750 = vst [vmem:[%s1712 + $0x128] sm:$0xff] %v1414
        %1751 = vst [vmem:[%s1712 + $0x130] sm:$0xff] %v1313
        %1752 = vst [vmem:[%s1712 + $0x138] sm:$0xff] %v1417
        %1753 = vst [vmem:[%s1712 + $0x140] sm:$0xff] %v1316
        %1754 = vst [vmem:[%s1712 + $0x148] sm:$0xff] %v1420
        %1755 = vst [vmem:[%s1712 + $0x150] sm:$0xff] %v1319
        %1756 = vst [vmem:[%s1712 + $0x158] sm:$0xff] %v1423
        %1757 = vst [vmem:[%s1712 + $0x160] sm:$0xff] %v1322
        %1758 = vst [vmem:[%s1712 + $0x168] sm:$0xff] %v1426
        %1759 = vst [vmem:[%s1712 + $0x170] sm:$0xff] %v1325
        %1760 = vst [vmem:[%s1712 + $0x178] sm:$0xff] %v1429
        %1761 = vst [vmem:[%s1712 + $0x180] sm:$0xff] %v1328
        %1762 = vst [vmem:[%s1712 + $0x188] sm:$0xff] %v1432
        %1763 = vst [vmem:[%s1712 + $0x190] sm:$0xff] %v1331
        %1764 = vst [vmem:[%s1712 + $0x198] sm:$0xff] %v1435
        %1765 = vst [vmem:[%s1712 + $0x1a0] sm:$0xff] %v1334
        %1766 = vst [vmem:[%s1712 + $0x1a8] sm:$0xff] %v1438
        %1767 = vst [vmem:[%s1712 + $0x1b0] sm:$0xff] %v1337
        %1768 = vst [vmem:[%s1712 + $0x1b8] sm:$0xff] %v1441
        %1769 = vst [vmem:[%s1712 + $0x1c0] sm:$0xff] %v1340
        %1770 = vst [vmem:[%s1712 + $0x1c8] sm:$0xff] %v1444
        %s1771 = scalar_lea.vmem %s191, 928 [#allocation11]
        %1772 = vst [vmem:[%s1771] sm:$0xff] %v1464
        %1773 = vst [vmem:[%s1771 + $0x8] sm:$0xff] %v1568
        %1774 = vst [vmem:[%s1771 + $0x10] sm:$0xff] %v1467
        %1775 = vst [vmem:[%s1771 + $0x18] sm:$0xff] %v1571
        %1776 = vst [vmem:[%s1771 + $0x20] sm:$0xff] %v1470
        %1777 = vst [vmem:[%s1771 + $0x28] sm:$0xff] %v1574
        %1778 = vst [vmem:[%s1771 + $0x30] sm:$0xff] %v1473
        %1779 = vst [vmem:[%s1771 + $0x38] sm:$0xff] %v1577
        %1780 = vst [vmem:[%s1771 + $0x40] sm:$0xff] %v1476
        %1781 = vst [vmem:[%s1771 + $0x48] sm:$0xff] %v1580
        %1782 = vst [vmem:[%s1771 + $0x50] sm:$0xff] %v1479
        %1783 = vst [vmem:[%s1771 + $0x58] sm:$0xff] %v1583
        %1784 = vst [vmem:[%s1771 + $0x60] sm:$0xff] %v1482
        %1785 = vst [vmem:[%s1771 + $0x68] sm:$0xff] %v1586
        %1786 = vst [vmem:[%s1771 + $0x70] sm:$0xff] %v1485
        %1787 = vst [vmem:[%s1771 + $0x78] sm:$0xff] %v1589
        %1788 = vst [vmem:[%s1771 + $0x80] sm:$0xff] %v1488
        %1789 = vst [vmem:[%s1771 + $0x88] sm:$0xff] %v1592
        %1790 = vst [vmem:[%s1771 + $0x90] sm:$0xff] %v1491
        %1791 = vst [vmem:[%s1771 + $0x98] sm:$0xff] %v1595
        %1792 = vst [vmem:[%s1771 + $0xa0] sm:$0xff] %v1494
        %1793 = vst [vmem:[%s1771 + $0xa8] sm:$0xff] %v1598
        %1794 = vst [vmem:[%s1771 + $0xb0] sm:$0xff] %v1497
        %1795 = vst [vmem:[%s1771 + $0xb8] sm:$0xff] %v1601
        %1796 = vst [vmem:[%s1771 + $0xc0] sm:$0xff] %v1500
        %1797 = vst [vmem:[%s1771 + $0xc8] sm:$0xff] %v1604
        %1798 = vst [vmem:[%s1771 + $0xd0] sm:$0xff] %v1503
        %1799 = vst [vmem:[%s1771 + $0xd8] sm:$0xff] %v1607
        %1800 = vst [vmem:[%s1771 + $0xe0] sm:$0xff] %v1506
        %1801 = vst [vmem:[%s1771 + $0xe8] sm:$0xff] %v1610
        %1802 = vst [vmem:[%s1771 + $0xf0] sm:$0xff] %v1509
        %1803 = vst [vmem:[%s1771 + $0xf8] sm:$0xff] %v1613
        %1804 = vst [vmem:[%s1771 + $0x100] sm:$0xff] %v1512
        %1805 = vst [vmem:[%s1771 + $0x108] sm:$0xff] %v1616
        %1806 = vst [vmem:[%s1771 + $0x110] sm:$0xff] %v1515
        %1807 = vst [vmem:[%s1771 + $0x118] sm:$0xff] %v1619
        %1808 = vst [vmem:[%s1771 + $0x120] sm:$0xff] %v1518
        %1809 = vst [vmem:[%s1771 + $0x128] sm:$0xff] %v1622
        %1810 = vst [vmem:[%s1771 + $0x130] sm:$0xff] %v1521
        %1811 = vst [vmem:[%s1771 + $0x138] sm:$0xff] %v1625
        %1812 = vst [vmem:[%s1771 + $0x140] sm:$0xff] %v1524
        %1813 = vst [vmem:[%s1771 + $0x148] sm:$0xff] %v1628
        %1814 = vst [vmem:[%s1771 + $0x150] sm:$0xff] %v1527
        %1815 = vst [vmem:[%s1771 + $0x158] sm:$0xff] %v1631
        %1816 = vst [vmem:[%s1771 + $0x160] sm:$0xff] %v1530
        %1817 = vst [vmem:[%s1771 + $0x168] sm:$0xff] %v1634
        %1818 = vst [vmem:[%s1771 + $0x170] sm:$0xff] %v1533
        %1819 = vst [vmem:[%s1771 + $0x178] sm:$0xff] %v1637
        %1820 = vst [vmem:[%s1771 + $0x180] sm:$0xff] %v1536
        %1821 = vst [vmem:[%s1771 + $0x188] sm:$0xff] %v1640
        %1822 = vst [vmem:[%s1771 + $0x190] sm:$0xff] %v1539
        %1823 = vst [vmem:[%s1771 + $0x198] sm:$0xff] %v1643
        %1824 = vst [vmem:[%s1771 + $0x1a0] sm:$0xff] %v1542
        %1825 = vst [vmem:[%s1771 + $0x1a8] sm:$0xff] %v1646
        %1826 = vst [vmem:[%s1771 + $0x1b0] sm:$0xff] %v1545
        %1827 = vst [vmem:[%s1771 + $0x1b8] sm:$0xff] %v1649
        %1828 = vst [vmem:[%s1771 + $0x1c0] sm:$0xff] %v1548
        %1829 = vst [vmem:[%s1771 + $0x1c8] sm:$0xff] %v1652
        %s1830 = sand.u32 %s95, 1
        %s1831 = scalar_lea.sflag [#allocation10], %s1830
        %s1832 = sand.u32 %s95, 1
        %s1833 = smul.addr %s1832, 1392
        %s1834 = scalar_lea.vmem [#allocation11], %s1833
        // Predicated region
        $region45: #{tpu_custom_call.1} parent=27 // pred_check
          %p1835 = pneg %p105
        $region46: #{tpu_custom_call.1} parent=27 // pred_check_branch
          %1837 = sbr.rel (%p1835) target = $region48
        $region47: #{tpu_custom_call.1} parent=27 // pred_region
          %1839 = vsyncadd %s1831, 0
          %s1840 = smul.addr %s35, 174
          %s1841 = smul.addr %s1840, 8
          %s1842 = scalar_lea.hbm %s5, %s1841
          %s1843 = sshll.u32 %s1834, 4
          %s1844 = int_to_ptr.vmem [resolvable:$true] %s1843
          %s1845 = sshll.u32 %s1842, 4
          %s1846 = int_to_ptr.hbm [resolvable:$true] %s1845
          %1851 = dma.vmem_to_hbm [thread:$0]  %s1844, 22272, %s1846, %s1831, 256, 256, 16
        $region48: #{tpu_custom_call.1} parent=27 // pred_fallthru
          _
      $region28: #{tpu_custom_call.1} parent=5 // pred_fallthru
        _
      %p1852 = scmp.le.s32.totalorder 2, %s30
      // Predicated region
      $region49: #{tpu_custom_call.1} parent=5 // pred_check
        %p1853 = pneg %p1852
      $region50: #{tpu_custom_call.1} parent=5 // pred_check_branch
        %1855 = sbr.rel (%p1853) target = $region52
      $region51: #{tpu_custom_call.1} parent=5 // pred_region
        %s1856 = ssub.s32 %s30, 2
        // Predicated region
        $region53: #{tpu_custom_call.1} parent=51 // pred_check
          %p1857 = pneg %p111
        $region54: #{tpu_custom_call.1} parent=51 // pred_check_branch
          %1859 = sbr.rel (%p1857) target = $region56
        $region55: #{tpu_custom_call.1} parent=51 // pred_region
          %s1860 = sand.u32 %s96, 1
          %s1861 = scalar_lea.sflag [#allocation10], %s1860
          %s1862 = sand.u32 %s96, 1
          %s1863 = smul.addr %s1862, 1392
          %s1864 = scalar_lea.vmem [#allocation11], %s1863
          %1866 = dma.done %s1861, 22272
        $region56: #{tpu_custom_call.1} parent=51 // pred_fallthru
          _
      $region52: #{tpu_custom_call.1} parent=5 // pred_fallthru
        _
    $region6: #{tpu_custom_call.1} parent=1 // loop_footer
      %s34 = sadd.s32 1, %s30
    $region7: #{tpu_custom_call.1} parent=1 // loop_footer_branch
      %29 = sbr.rel target = $region3
    $region8: #{tpu_custom_call.1} parent=1 // loop_exit
      _
    %1867 = vsyncpa [#allocation9], 1
    %s1868 = scalar_lea.sflag [#allocation9], 1
    %1869 = vsyncpa %s1868, 1
    %1870 = vsyncpa [#allocation10], 1
    %s1871 = scalar_lea.sflag [#allocation10], 1
    %1872 = vsyncpa %s1871, 1
  %1873 = vsyncmov [#allocation4]
  %s1874 = vpop.sfrf %1873
  %p1875 = scmp.eq.s32.totalorder %s1874, 0
  %p1876 = pneg %p1875
  %1878 = shalt.err (%p1876)
  %s1879 = scalar_lea.sflag [#allocation4], 1
  %1880 = vsyncmov %s1879
  %s1881 = vpop.sfrf %1880
  %p1882 = scmp.eq.s32.totalorder %s1881, 0
  %p1883 = pneg %p1882
  %1885 = shalt.err (%p1883)

</llo_original>
